<compile_context>
chip_gen: v5e
topology: v5e:2x2
jax: 0.10.0
libtpu: 0.0.40
codegen_flags: <defaults>
</compile_context>

<pallas_src>
import functools

import jax
import jax.numpy as jnp
from jax.experimental import pallas as pl
from jax.experimental.pallas import tpu as pltpu

EPS = 1e-5
NEG_SLOPE = 0.2
LANE = 128


def _round_up(x, m):
    return (x + m - 1) // m * m


def _bn_train(x, gamma=None, beta=None):
    """BatchNorm1d in training mode: biased batch statistics over axis 0.
    Centered tensor computed once and reused (cuts VPU work / live temps)."""
    mean = jnp.mean(x, axis=0, keepdims=True)
    xc = x - mean
    var = jnp.mean(xc * xc, axis=0, keepdims=True)
    xhat = xc * jax.lax.rsqrt(var + EPS)
    if gamma is not None:
        xhat = xhat * gamma + beta
    return xhat


def _leaky_relu(x):
    # max(x, 0.2*x) instead of compare+select.
    return jnp.maximum(x, NEG_SLOPE * x)


# ------------------------------ Pallas kernel ------------------------------

def encoder_kernel(x_ref,
                   w1_ref, b1_ref, g1_ref, be1_ref,
                   w2_ref, b2_ref, g2_ref, be2_ref,
                   w3_ref, b3_ref,
                   emb_ref, bn_ref,
                   acc_ref):
    """Feature(K)-tiled per-modality pipeline.

    Per grid step k:
      input-BN(affine=False) on the (n, tile_k) feature tile (exact, BN stats
      are per-feature), write the bn output tile, and accumulate
      xbn_tile @ w1_tile into the VMEM f32 accumulator.
    On the last step: bias + BN(affine) + LeakyReLU, second Linear+BN+LeakyReLU,
    final Linear, write the (lane-dense, padded) embedding.
    """
    k = pl.program_id(0)
    nk = pl.num_programs(0)

    @pl.when(k == 0)
    def _():
        acc_ref[...] = jnp.zeros_like(acc_ref)

    # Input BatchNorm1d (affine=False) on this feature tile.
    x = x_ref[...].astype(jnp.float32)
    xbn = _bn_train(x)
    bn_ref[...] = xbn.astype(bn_ref.dtype)

    # First Linear, accumulated over K tiles. bf16 operands, f32 accumulate.
    acc_ref[...] += jnp.dot(xbn.astype(w1_ref.dtype), w1_ref[...],
                            preferred_element_type=jnp.float32)

    @pl.when(k == nk - 1)
    def _():
        h = acc_ref[...] + b1_ref[...]
        h = _leaky_relu(_bn_train(h, g1_ref[...], be1_ref[...]))
        h = jnp.dot(h.astype(w2_ref.dtype), w2_ref[...],
                    preferred_element_type=jnp.float32) + b2_ref[...]
        h = _leaky_relu(_bn_train(h, g2_ref[...], be2_ref[...]))
        out = jnp.dot(h.astype(w3_ref.dtype), w3_ref[...],
                      preferred_element_type=jnp.float32) + b3_ref[...]
        emb_ref[...] = out.astype(emb_ref.dtype)


# ------------------------------ host wrapper -------------------------------

def _pad2(a, rows, cols):
    return jnp.pad(a, ((0, rows - a.shape[0]), (0, cols - a.shape[1])))


def _vmem_limit_bytes(n, tile_k, hid_pad, out_pad, mm_bytes):
    f32 = 4
    x_tile = n * tile_k * f32
    bn_tile = n * tile_k * f32
    w1_tile = tile_k * hid_pad * mm_bytes
    resident = ((hid_pad * hid_pad + hid_pad * out_pad) * mm_bytes
                + 6 * hid_pad * f32 + out_pad * f32)
    acc = n * hid_pad * f32
    emb = n * out_pad * f32
    est = 2 * (x_tile + bn_tile + w1_tile) + resident + acc + emb  # dbl-buffered tiles
    # 2x headroom for compiler temporaries; clamp to v7x's 64 MiB physical VMEM.
    return int(min(max(2 * est, 16 * 1024 * 1024), 64 * 1024 * 1024))


def encoder_forward(x, p, *, tile_k=512, mm_dtype=jnp.bfloat16):
    """Run one modality's encoder (input-BN included) as a single Pallas call."""
    n, d_in = x.shape
    hidden = p["w1"].shape[1]
    out_dim = p["w3"].shape[1]

    assert tile_k % LANE == 0, "tile_k must be a multiple of 128"
    tile_k = min(tile_k, _round_up(d_in, LANE))
    d_pad = _round_up(d_in, tile_k)
    hid_pad = _round_up(hidden, LANE)
    out_pad = _round_up(out_dim, LANE)
    nk = d_pad // tile_k
    mm_bytes = jnp.dtype(mm_dtype).itemsize

    # Zero-padding is exact: padded x columns only affect their own (discarded)
    # BN stats; padded w rows/cols contribute 0; padded BN gamma/beta are 0.
    xp = _pad2(x.astype(jnp.float32), n, d_pad)
    w1 = _pad2(p["w1"], d_pad, hid_pad).astype(mm_dtype)
    w2 = _pad2(p["w2"], hid_pad, hid_pad).astype(mm_dtype)
    w3 = _pad2(p["w3"], hid_pad, out_pad).astype(mm_dtype)
    b1 = _pad2(p["b1"], 1, hid_pad)
    g1 = _pad2(p["g1"], 1, hid_pad)
    be1 = _pad2(p["be1"], 1, hid_pad)
    b2 = _pad2(p["b2"], 1, hid_pad)
    g2 = _pad2(p["g2"], 1, hid_pad)
    be2 = _pad2(p["be2"], 1, hid_pad)
    b3 = _pad2(p["b3"], 1, out_pad)

    def const(shape):
        # Constant block index -> Pallas keeps the block VMEM-resident (no re-DMA).
        return pl.BlockSpec(shape, lambda k: (0, 0))

    in_specs = [
        pl.BlockSpec((n, tile_k), lambda k: (0, k)),        # x feature tile
        pl.BlockSpec((tile_k, hid_pad), lambda k: (k, 0)),  # w1 K tile
        const((1, hid_pad)),   # b1
        const((1, hid_pad)),   # g1
        const((1, hid_pad)),   # be1
        const((hid_pad, hid_pad)),  # w2
        const((1, hid_pad)),   # b2
        const((1, hid_pad)),   # g2
        const((1, hid_pad)),   # be2
        const((hid_pad, out_pad)),  # w3
        const((1, out_pad)),   # b3
    ]
    out_specs = (
        pl.BlockSpec((n, out_pad), lambda k: (0, 0)),  # embedding (lane-dense)
        pl.BlockSpec((n, tile_k), lambda k: (0, k)),   # batch-normed input tile
    )

    flops = 2 * n * (d_pad * hid_pad + hid_pad * hid_pad + hid_pad * out_pad)
    bytes_accessed = (xp.size * 4 + w1.size * mm_bytes + w2.size * mm_bytes
                      + w3.size * mm_bytes + n * d_pad * 4 + n * out_pad * 4
                      + 6 * hid_pad * 4 + out_pad * 4)
    transcendentals = d_pad + 2 * hid_pad  # one rsqrt per BN feature

    call = pl.pallas_call(
        encoder_kernel,
        out_shape=(
            jax.ShapeDtypeStruct((n, out_pad), jnp.float32),  # embedding (padded)
            jax.ShapeDtypeStruct((n, d_pad), jnp.float32),    # bn input (padded)
        ),
        grid_spec=pltpu.PrefetchScalarGridSpec(
            num_scalar_prefetch=0,
            grid=(nk,),
            in_specs=in_specs,
            out_specs=out_specs,
            scratch_shapes=[pltpu.VMEM((n, hid_pad), jnp.float32)],
        ),
        compiler_params=pltpu.CompilerParams(
            dimension_semantics=("arbitrary",),  # K reduction axis
            vmem_limit_bytes=_vmem_limit_bytes(n, tile_k, hid_pad, out_pad,
                                               mm_bytes),
        ),
        cost_estimate=pl.CostEstimate(flops=flops,
                                      transcendentals=transcendentals,
                                      bytes_accessed=bytes_accessed),
    )
    emb_pad, bn_pad = call(xp, w1, b1, g1, be1, w2, b2, g2, be2, w3, b3)
    return emb_pad[:, :out_dim], bn_pad[:, :d_in]


@functools.partial(jax.jit, static_argnames=("tile_k", "mm_dtype"))
def bn_resid_encoder_forward(rna_data, atac_data, rna_params, atac_params,
                             *, tile_k=512, mm_dtype=jnp.bfloat16):
    rna_emb, rna_bn = encoder_forward(rna_data, rna_params,
                                      tile_k=tile_k, mm_dtype=mm_dtype)
    atac_emb, atac_bn = encoder_forward(atac_data, atac_params,
                                        tile_k=tile_k, mm_dtype=mm_dtype)
    return rna_emb, atac_emb, rna_bn, atac_bn


# ------------------------- parameter construction -------------------------

def _linear_init(key, fan_in, fan_out):
    """PyTorch nn.Linear default init bounds, stored as [in, out] plus [1, out]."""
    kw, kb = jax.random.split(key)
    bound = 1.0 / jnp.sqrt(jnp.float32(fan_in))
    w = jax.random.uniform(kw, (fan_in, fan_out), jnp.float32, -bound, bound)
    b = jax.random.uniform(kb, (1, fan_out), jnp.float32, -bound, bound)
    return w, b


def make_encoder_params(key, in_dim, hidden_dim, out_dim):
    k1, k2, k3 = jax.random.split(key, 3)
    w1, b1 = _linear_init(k1, in_dim, hidden_dim)
    w2, b2 = _linear_init(k2, hidden_dim, hidden_dim)
    w3, b3 = _linear_init(k3, hidden_dim, out_dim)
    return {
        "w1": w1, "b1": b1,
        "g1": jnp.ones((1, hidden_dim), jnp.float32),    # BatchNorm1d weight
        "be1": jnp.zeros((1, hidden_dim), jnp.float32),  # BatchNorm1d bias
        "w2": w2, "b2": b2,
        "g2": jnp.ones((1, hidden_dim), jnp.float32),
        "be2": jnp.zeros((1, hidden_dim), jnp.float32),
        "w3": w3, "b3": b3,
    }


# ----------------------------- pure-JAX reference -----------------------------

def encoder_ref(x, p, mm_dtype=jnp.bfloat16):
    def dot(a, w):
        return jnp.dot(a.astype(mm_dtype), w.astype(mm_dtype),
                       preferred_element_type=jnp.float32)
    xbn = _bn_train(x.astype(jnp.float32))
    h = _leaky_relu(_bn_train(dot(xbn, p["w1"]) + p["b1"], p["g1"], p["be1"]))
    h = _leaky_relu(_bn_train(dot(h, p["w2"]) + p["b2"], p["g2"], p["be2"]))
    return dot(h, p["w3"]) + p["b3"], xbn


if __name__ == "__main__":
    BATCH = 8
    RNA_IN = 300    # padded to 384 -> 3 K-tiles of 128 (exercises accumulation)
    ATAC_IN = 200   # padded to 256 -> 2 K-tiles of 128
    HIDDEN = 32     # padded to 128 lanes
    OUT_DIM = 8     # padded to 128 lanes
    TILE_K = 128    # small tile for the demo; production default is 512

    key = jax.random.PRNGKey(0)
    k_rna_x, k_atac_x, k_rna_p, k_atac_p = jax.random.split(key, 4)

    rna_data = jax.random.normal(k_rna_x, (BATCH, RNA_IN), jnp.float32)
    atac_data = jax.random.normal(k_atac_x, (BATCH, ATAC_IN), jnp.float32)

    rna_params = make_encoder_params(k_rna_p, RNA_IN, HIDDEN, OUT_DIM)
    atac_params = make_encoder_params(k_atac_p, ATAC_IN, HIDDEN, OUT_DIM)

    rna_emb, atac_emb, rna_bn, atac_bn = jax.block_until_ready(
        bn_resid_encoder_forward(rna_data, atac_data, rna_params, atac_params,
                                 tile_k=TILE_K))

    # Correctness check against a plain-JAX reference of the same math
    # (same bf16 matmul operands, f32 accumulation).
    rna_emb_ref, rna_bn_ref = encoder_ref(rna_data, rna_params)
    atac_emb_ref, atac_bn_ref = encoder_ref(atac_data, atac_params)
    assert jnp.allclose(rna_bn, rna_bn_ref, atol=1e-3, rtol=1e-3)
    assert jnp.allclose(atac_bn, atac_bn_ref, atol=1e-3, rtol=1e-3)
    assert jnp.allclose(rna_emb, rna_emb_ref, atol=2e-2, rtol=2e-2)
    assert jnp.allclose(atac_emb, atac_emb_ref, atol=2e-2, rtol=2e-2)

    print("KERNEL_OK")
</pallas_src>

<mosaic_0001>
module attributes {stable_mosaic.version = 11 : i64} {
  func.func @encoder_kernel(%arg0: i32, %arg1: memref<8x128xf32, #tpu.memory_space<vmem>>, %arg2: memref<128x128xbf16, #tpu.memory_space<vmem>>, %arg3: memref<1x128xf32, #tpu.memory_space<vmem>>, %arg4: memref<1x128xf32, #tpu.memory_space<vmem>>, %arg5: memref<1x128xf32, #tpu.memory_space<vmem>>, %arg6: memref<128x128xbf16, #tpu.memory_space<vmem>>, %arg7: memref<1x128xf32, #tpu.memory_space<vmem>>, %arg8: memref<1x128xf32, #tpu.memory_space<vmem>>, %arg9: memref<1x128xf32, #tpu.memory_space<vmem>>, %arg10: memref<128x128xbf16, #tpu.memory_space<vmem>>, %arg11: memref<1x128xf32, #tpu.memory_space<vmem>>, %arg12: memref<8x128xf32, #tpu.memory_space<vmem>>, %arg13: memref<8x128xf32, #tpu.memory_space<vmem>>, %arg14: memref<8x128xf32, #tpu.memory_space<vmem>>) attributes {dimension_semantics = [#tpu.dimension_semantics<arbitrary>], iteration_bounds = array<i64: 3>, scalar_prefetch = 0 : i64, scratch_operands = 1 : i64, tpu.core_type = #tpu.core_type<tc>, window_params = [{transform_indices = @transform_0, window_bounds = array<i64: 8, 128>}, {transform_indices = @transform_1, window_bounds = array<i64: 128, 128>}, {pipeline_mode = #tpu.pipeline_mode<synchronous>, transform_indices = @transform_2, window_bounds = array<i64: 1, 128>}, {pipeline_mode = #tpu.pipeline_mode<synchronous>, transform_indices = @transform_3, window_bounds = array<i64: 1, 128>}, {pipeline_mode = #tpu.pipeline_mode<synchronous>, transform_indices = @transform_4, window_bounds = array<i64: 1, 128>}, {pipeline_mode = #tpu.pipeline_mode<synchronous>, transform_indices = @transform_5, window_bounds = array<i64: 128, 128>}, {pipeline_mode = #tpu.pipeline_mode<synchronous>, transform_indices = @transform_6, window_bounds = array<i64: 1, 128>}, {pipeline_mode = #tpu.pipeline_mode<synchronous>, transform_indices = @transform_7, window_bounds = array<i64: 1, 128>}, {pipeline_mode = #tpu.pipeline_mode<synchronous>, transform_indices = @transform_8, window_bounds = array<i64: 1, 128>}, {pipeline_mode = #tpu.pipeline_mode<synchronous>, transform_indices = @transform_9, window_bounds = array<i64: 128, 128>}, {pipeline_mode = #tpu.pipeline_mode<synchronous>, transform_indices = @transform_10, window_bounds = array<i64: 1, 128>}, {pipeline_mode = #tpu.pipeline_mode<synchronous>, transform_indices = @transform_11, window_bounds = array<i64: 8, 128>}, {transform_indices = @transform_12, window_bounds = array<i64: 8, 128>}]} {
    %c0_i32 = arith.constant 0 : i32
    %0 = arith.cmpi eq, %arg0, %c0_i32 : i32
    %1 = arith.extui %0 : i1 to i32
    %c0_i32_0 = arith.constant 0 : i32
    %2 = arith.cmpi ne, %1, %c0_i32_0 : i32
    scf.if %2 {
      %cst_16 = arith.constant 0.000000e+00 : f32
      %30 = vector.broadcast %cst_16 : f32 to vector<8x128xf32>
      %c0_17 = arith.constant 0 : index
      %c0_18 = arith.constant 0 : index
      %31 = vector.load %arg14[%c0_17, %c0_18] : memref<8x128xf32, #tpu.memory_space<vmem>>, vector<8x128xf32>
      tpu.vector_store %arg14[%c0_17, %c0_18], %30 {strides = array<i32>} : memref<8x128xf32, #tpu.memory_space<vmem>>, vector<8x128xf32>,
    } else {
    }
    %c0 = arith.constant 0 : index
    %c0_1 = arith.constant 0 : index
    %3 = vector.load %arg1[%c0, %c0_1] : memref<8x128xf32, #tpu.memory_space<vmem>>, vector<8x128xf32>
    %cst = arith.constant dense<0.000000e+00> : vector<128xf32>
    %4 = vector.multi_reduction <add>, %3, %cst [0] : vector<8x128xf32> to vector<128xf32>
    %5 = vector.shape_cast %4 : vector<128xf32> to vector<1x128xf32>
    %cst_2 = arith.constant 8.000000e+00 : f32
    %6 = vector.broadcast %cst_2 : f32 to vector<1x128xf32>
    %7 = arith.divf %5, %6 : vector<1x128xf32>
    %8 = vector.broadcast %7 : vector<1x128xf32> to vector<8x128xf32>
    %9 = arith.subf %3, %8 : vector<8x128xf32>
    %10 = arith.mulf %9, %9 : vector<8x128xf32>
    %cst_3 = arith.constant dense<0.000000e+00> : vector<128xf32>
    %11 = vector.multi_reduction <add>, %10, %cst_3 [0] : vector<8x128xf32> to vector<128xf32>
    %12 = vector.shape_cast %11 : vector<128xf32> to vector<1x128xf32>
    %cst_4 = arith.constant 8.000000e+00 : f32
    %13 = vector.broadcast %cst_4 : f32 to vector<1x128xf32>
    %14 = arith.divf %12, %13 : vector<1x128xf32>
    %cst_5 = arith.constant 9.99999974E-6 : f32
    %15 = vector.broadcast %cst_5 : f32 to vector<1x128xf32>
    %16 = arith.addf %14, %15 : vector<1x128xf32>
    %17 = math.rsqrt %16 : vector<1x128xf32>
    %18 = vector.broadcast %17 : vector<1x128xf32> to vector<8x128xf32>
    %19 = arith.mulf %9, %18 : vector<8x128xf32>
    %c0_6 = arith.constant 0 : index
    %c0_7 = arith.constant 0 : index
    %20 = vector.load %arg13[%c0_6, %c0_7] : memref<8x128xf32, #tpu.memory_space<vmem>>, vector<8x128xf32>
    tpu.vector_store %arg13[%c0_6, %c0_7], %19 {strides = array<i32>} : memref<8x128xf32, #tpu.memory_space<vmem>>, vector<8x128xf32>,
    %c0_8 = arith.constant 0 : index
    %c0_9 = arith.constant 0 : index
    %21 = vector.load %arg14[%c0_8, %c0_9] : memref<8x128xf32, #tpu.memory_space<vmem>>, vector<8x128xf32>
    %22 = arith.truncf %19 : vector<8x128xf32> to vector<8x128xbf16>
    %c0_10 = arith.constant 0 : index
    %c0_11 = arith.constant 0 : index
    %23 = vector.load %arg2[%c0_10, %c0_11] : memref<128x128xbf16, #tpu.memory_space<vmem>>, vector<128x128xbf16>
    %cst_12 = arith.constant dense<0.000000e+00> : vector<8x128xf32>
    %24 = tpu.matmul %22, %23, %cst_12 {dimension_numbers = #tpu.dot_dimension_numbers<[1], [0], [0], [1], [0, 0, 1, 1], [], []>} : vector<8x128xbf16>, vector<128x128xbf16>, vector<8x128xf32> -> vector<8x128xf32>
    %25 = arith.addf %21, %24 : vector<8x128xf32>
    %c0_13 = arith.constant 0 : index
    %c0_14 = arith.constant 0 : index
    %26 = vector.load %arg14[%c0_13, %c0_14] : memref<8x128xf32, #tpu.memory_space<vmem>>, vector<8x128xf32>
    tpu.vector_store %arg14[%c0_13, %c0_14], %25 {strides = array<i32>} : memref<8x128xf32, #tpu.memory_space<vmem>>, vector<8x128xf32>,
    %c2_i32 = arith.constant 2 : i32
    %27 = arith.cmpi eq, %arg0, %c2_i32 : i32
    %28 = arith.extui %27 : i1 to i32
    %c0_i32_15 = arith.constant 0 : i32
    %29 = arith.cmpi ne, %28, %c0_i32_15 : i32
    scf.if %29 {
      %c0_16 = arith.constant 0 : index
      %c0_17 = arith.constant 0 : index
      %30 = vector.load %arg14[%c0_16, %c0_17] : memref<8x128xf32, #tpu.memory_space<vmem>>, vector<8x128xf32>
      %c0_18 = arith.constant 0 : index
      %c0_19 = arith.constant 0 : index
      %31 = vector.load %arg3[%c0_18, %c0_19] : memref<1x128xf32, #tpu.memory_space<vmem>>, vector<1x128xf32>
      %32 = vector.broadcast %31 : vector<1x128xf32> to vector<8x128xf32>
      %33 = arith.addf %30, %32 : vector<8x128xf32>
      %c0_20 = arith.constant 0 : index
      %c0_21 = arith.constant 0 : index
      %34 = vector.load %arg4[%c0_20, %c0_21] : memref<1x128xf32, #tpu.memory_space<vmem>>, vector<1x128xf32>
      %c0_22 = arith.constant 0 : index
      %c0_23 = arith.constant 0 : index
      %35 = vector.load %arg5[%c0_22, %c0_23] : memref<1x128xf32, #tpu.memory_space<vmem>>, vector<1x128xf32>
      %cst_24 = arith.constant dense<0.000000e+00> : vector<128xf32>
      %36 = vector.multi_reduction <add>, %33, %cst_24 [0] : vector<8x128xf32> to vector<128xf32>
      %37 = vector.shape_cast %36 : vector<128xf32> to vector<1x128xf32>
      %cst_25 = arith.constant 8.000000e+00 : f32
      %38 = vector.broadcast %cst_25 : f32 to vector<1x128xf32>
      %39 = arith.divf %37, %38 : vector<1x128xf32>
      %40 = vector.broadcast %39 : vector<1x128xf32> to vector<8x128xf32>
      %41 = arith.subf %33, %40 : vector<8x128xf32>
      %42 = arith.mulf %41, %41 : vector<8x128xf32>
      %cst_26 = arith.constant dense<0.000000e+00> : vector<128xf32>
      %43 = vector.multi_reduction <add>, %42, %cst_26 [0] : vector<8x128xf32> to vector<128xf32>
      %44 = vector.shape_cast %43 : vector<128xf32> to vector<1x128xf32>
      %cst_27 = arith.constant 8.000000e+00 : f32
      %45 = vector.broadcast %cst_27 : f32 to vector<1x128xf32>
      %46 = arith.divf %44, %45 : vector<1x128xf32>
      %cst_28 = arith.constant 9.99999974E-6 : f32
      %47 = vector.broadcast %cst_28 : f32 to vector<1x128xf32>
      %48 = arith.addf %46, %47 : vector<1x128xf32>
      %49 = math.rsqrt %48 : vector<1x128xf32>
      %50 = vector.broadcast %49 : vector<1x128xf32> to vector<8x128xf32>
      %51 = arith.mulf %41, %50 : vector<8x128xf32>
      %52 = vector.broadcast %34 : vector<1x128xf32> to vector<8x128xf32>
      %53 = arith.mulf %51, %52 : vector<8x128xf32>
      %54 = vector.broadcast %35 : vector<1x128xf32> to vector<8x128xf32>
      %55 = arith.addf %53, %54 : vector<8x128xf32>
      %cst_29 = arith.constant 2.000000e-01 : f32
      %56 = vector.broadcast %cst_29 : f32 to vector<8x128xf32>
      %57 = arith.mulf %56, %55 : vector<8x128xf32>
      %58 = arith.maximumf %55, %57 : vector<8x128xf32>
      %59 = arith.truncf %58 : vector<8x128xf32> to vector<8x128xbf16>
      %c0_30 = arith.constant 0 : index
      %c0_31 = arith.constant 0 : index
      %60 = vector.load %arg6[%c0_30, %c0_31] : memref<128x128xbf16, #tpu.memory_space<vmem>>, vector<128x128xbf16>
      %cst_32 = arith.constant dense<0.000000e+00> : vector<8x128xf32>
      %61 = tpu.matmul %59, %60, %cst_32 {dimension_numbers = #tpu.dot_dimension_numbers<[1], [0], [0], [1], [0, 0, 1, 1], [], []>} : vector<8x128xbf16>, vector<128x128xbf16>, vector<8x128xf32> -> vector<8x128xf32>
      %c0_33 = arith.constant 0 : index
      %c0_34 = arith.constant 0 : index
      %62 = vector.load %arg7[%c0_33, %c0_34] : memref<1x128xf32, #tpu.memory_space<vmem>>, vector<1x128xf32>
      %63 = vector.broadcast %62 : vector<1x128xf32> to vector<8x128xf32>
      %64 = arith.addf %61, %63 : vector<8x128xf32>
      %c0_35 = arith.constant 0 : index
      %c0_36 = arith.constant 0 : index
      %65 = vector.load %arg8[%c0_35, %c0_36] : memref<1x128xf32, #tpu.memory_space<vmem>>, vector<1x128xf32>
      %c0_37 = arith.constant 0 : index
      %c0_38 = arith.constant 0 : index
      %66 = vector.load %arg9[%c0_37, %c0_38] : memref<1x128xf32, #tpu.memory_space<vmem>>, vector<1x128xf32>
      %cst_39 = arith.constant dense<0.000000e+00> : vector<128xf32>
      %67 = vector.multi_reduction <add>, %64, %cst_39 [0] : vector<8x128xf32> to vector<128xf32>
      %68 = vector.shape_cast %67 : vector<128xf32> to vector<1x128xf32>
      %cst_40 = arith.constant 8.000000e+00 : f32
      %69 = vector.broadcast %cst_40 : f32 to vector<1x128xf32>
      %70 = arith.divf %68, %69 : vector<1x128xf32>
      %71 = vector.broadcast %70 : vector<1x128xf32> to vector<8x128xf32>
      %72 = arith.subf %64, %71 : vector<8x128xf32>
      %73 = arith.mulf %72, %72 : vector<8x128xf32>
      %cst_41 = arith.constant dense<0.000000e+00> : vector<128xf32>
      %74 = vector.multi_reduction <add>, %73, %cst_41 [0] : vector<8x128xf32> to vector<128xf32>
      %75 = vector.shape_cast %74 : vector<128xf32> to vector<1x128xf32>
      %cst_42 = arith.constant 8.000000e+00 : f32
      %76 = vector.broadcast %cst_42 : f32 to vector<1x128xf32>
      %77 = arith.divf %75, %76 : vector<1x128xf32>
      %cst_43 = arith.constant 9.99999974E-6 : f32
      %78 = vector.broadcast %cst_43 : f32 to vector<1x128xf32>
      %79 = arith.addf %77, %78 : vector<1x128xf32>
      %80 = math.rsqrt %79 : vector<1x128xf32>
      %81 = vector.broadcast %80 : vector<1x128xf32> to vector<8x128xf32>
      %82 = arith.mulf %72, %81 : vector<8x128xf32>
      %83 = vector.broadcast %65 : vector<1x128xf32> to vector<8x128xf32>
      %84 = arith.mulf %82, %83 : vector<8x128xf32>
      %85 = vector.broadcast %66 : vector<1x128xf32> to vector<8x128xf32>
      %86 = arith.addf %84, %85 : vector<8x128xf32>
      %cst_44 = arith.constant 2.000000e-01 : f32
      %87 = vector.broadcast %cst_44 : f32 to vector<8x128xf32>
      %88 = arith.mulf %87, %86 : vector<8x128xf32>
      %89 = arith.maximumf %86, %88 : vector<8x128xf32>
      %90 = arith.truncf %89 : vector<8x128xf32> to vector<8x128xbf16>
      %c0_45 = arith.constant 0 : index
      %c0_46 = arith.constant 0 : index
      %91 = vector.load %arg10[%c0_45, %c0_46] : memref<128x128xbf16, #tpu.memory_space<vmem>>, vector<128x128xbf16>
      %cst_47 = arith.constant dense<0.000000e+00> : vector<8x128xf32>
      %92 = tpu.matmul %90, %91, %cst_47 {dimension_numbers = #tpu.dot_dimension_numbers<[1], [0], [0], [1], [0, 0, 1, 1], [], []>} : vector<8x128xbf16>, vector<128x128xbf16>, vector<8x128xf32> -> vector<8x128xf32>
      %c0_48 = arith.constant 0 : index
      %c0_49 = arith.constant 0 : index
      %93 = vector.load %arg11[%c0_48, %c0_49] : memref<1x128xf32, #tpu.memory_space<vmem>>, vector<1x128xf32>
      %94 = vector.broadcast %93 : vector<1x128xf32> to vector<8x128xf32>
      %95 = arith.addf %92, %94 : vector<8x128xf32>
      %c0_50 = arith.constant 0 : index
      %c0_51 = arith.constant 0 : index
      %96 = vector.load %arg12[%c0_50, %c0_51] : memref<8x128xf32, #tpu.memory_space<vmem>>, vector<8x128xf32>
      tpu.vector_store %arg12[%c0_50, %c0_51], %95 {strides = array<i32>} : memref<8x128xf32, #tpu.memory_space<vmem>>, vector<8x128xf32>,
    } else {
    }
    return
  }
  func.func @transform_0(%arg0: i32) -> (i32, i32) {
    %c0_i32 = arith.constant 0 : i32
    %c0_i32_0 = arith.constant 0 : i32
    return %c0_i32, %arg0 : i32, i32
  }
  func.func @transform_1(%arg0: i32) -> (i32, i32) {
    %c0_i32 = arith.constant 0 : i32
    %c0_i32_0 = arith.constant 0 : i32
    return %arg0, %c0_i32 : i32, i32
  }
  func.func @transform_2(%arg0: i32) -> (i32, i32) {
    %c0_i32 = arith.constant 0 : i32
    %c0_i32_0 = arith.constant 0 : i32
    %c0_i32_1 = arith.constant 0 : i32
    return %c0_i32, %c0_i32_0 : i32, i32
  }
  func.func @transform_3(%arg0: i32) -> (i32, i32) {
    %c0_i32 = arith.constant 0 : i32
    %c0_i32_0 = arith.constant 0 : i32
    %c0_i32_1 = arith.constant 0 : i32
    return %c0_i32, %c0_i32_0 : i32, i32
  }
  func.func @transform_4(%arg0: i32) -> (i32, i32) {
    %c0_i32 = arith.constant 0 : i32
    %c0_i32_0 = arith.constant 0 : i32
    %c0_i32_1 = arith.constant 0 : i32
    return %c0_i32, %c0_i32_0 : i32, i32
  }
  func.func @transform_5(%arg0: i32) -> (i32, i32) {
    %c0_i32 = arith.constant 0 : i32
    %c0_i32_0 = arith.constant 0 : i32
    %c0_i32_1 = arith.constant 0 : i32
    return %c0_i32, %c0_i32_0 : i32, i32
  }
  func.func @transform_6(%arg0: i32) -> (i32, i32) {
    %c0_i32 = arith.constant 0 : i32
    %c0_i32_0 = arith.constant 0 : i32
    %c0_i32_1 = arith.constant 0 : i32
    return %c0_i32, %c0_i32_0 : i32, i32
  }
  func.func @transform_7(%arg0: i32) -> (i32, i32) {
    %c0_i32 = arith.constant 0 : i32
    %c0_i32_0 = arith.constant 0 : i32
    %c0_i32_1 = arith.constant 0 : i32
    return %c0_i32, %c0_i32_0 : i32, i32
  }
  func.func @transform_8(%arg0: i32) -> (i32, i32) {
    %c0_i32 = arith.constant 0 : i32
    %c0_i32_0 = arith.constant 0 : i32
    %c0_i32_1 = arith.constant 0 : i32
    return %c0_i32, %c0_i32_0 : i32, i32
  }
  func.func @transform_9(%arg0: i32) -> (i32, i32) {
    %c0_i32 = arith.constant 0 : i32
    %c0_i32_0 = arith.constant 0 : i32
    %c0_i32_1 = arith.constant 0 : i32
    return %c0_i32, %c0_i32_0 : i32, i32
  }
  func.func @transform_10(%arg0: i32) -> (i32, i32) {
    %c0_i32 = arith.constant 0 : i32
    %c0_i32_0 = arith.constant 0 : i32
    %c0_i32_1 = arith.constant 0 : i32
    return %c0_i32, %c0_i32_0 : i32, i32
  }
  func.func @transform_11(%arg0: i32) -> (i32, i32) {
    %c0_i32 = arith.constant 0 : i32
    %c0_i32_0 = arith.constant 0 : i32
    %c0_i32_1 = arith.constant 0 : i32
    return %c0_i32, %c0_i32_0 : i32, i32
  }
  func.func @transform_12(%arg0: i32) -> (i32, i32) {
    %c0_i32 = arith.constant 0 : i32
    %c0_i32_0 = arith.constant 0 : i32
    return %c0_i32, %arg0 : i32, i32
  }
}

module attributes {stable_mosaic.version = 11 : i64} {
  func.func @encoder_kernel(%arg0: i32, %arg1: memref<8x128xf32, #tpu.memory_space<vmem>>, %arg2: memref<128x128xbf16, #tpu.memory_space<vmem>>, %arg3: memref<1x128xf32, #tpu.memory_space<vmem>>, %arg4: memref<1x128xf32, #tpu.memory_space<vmem>>, %arg5: memref<1x128xf32, #tpu.memory_space<vmem>>, %arg6: memref<128x128xbf16, #tpu.memory_space<vmem>>, %arg7: memref<1x128xf32, #tpu.memory_space<vmem>>, %arg8: memref<1x128xf32, #tpu.memory_space<vmem>>, %arg9: memref<1x128xf32, #tpu.memory_space<vmem>>, %arg10: memref<128x128xbf16, #tpu.memory_space<vmem>>, %arg11: memref<1x128xf32, #tpu.memory_space<vmem>>, %arg12: memref<8x128xf32, #tpu.memory_space<vmem>>, %arg13: memref<8x128xf32, #tpu.memory_space<vmem>>, %arg14: memref<8x128xf32, #tpu.memory_space<vmem>>) attributes {dimension_semantics = [#tpu.dimension_semantics<arbitrary>], iteration_bounds = array<i64: 2>, scalar_prefetch = 0 : i64, scratch_operands = 1 : i64, tpu.core_type = #tpu.core_type<tc>, window_params = [{transform_indices = @transform_0, window_bounds = array<i64: 8, 128>}, {transform_indices = @transform_1, window_bounds = array<i64: 128, 128>}, {pipeline_mode = #tpu.pipeline_mode<synchronous>, transform_indices = @transform_2, window_bounds = array<i64: 1, 128>}, {pipeline_mode = #tpu.pipeline_mode<synchronous>, transform_indices = @transform_3, window_bounds = array<i64: 1, 128>}, {pipeline_mode = #tpu.pipeline_mode<synchronous>, transform_indices = @transform_4, window_bounds = array<i64: 1, 128>}, {pipeline_mode = #tpu.pipeline_mode<synchronous>, transform_indices = @transform_5, window_bounds = array<i64: 128, 128>}, {pipeline_mode = #tpu.pipeline_mode<synchronous>, transform_indices = @transform_6, window_bounds = array<i64: 1, 128>}, {pipeline_mode = #tpu.pipeline_mode<synchronous>, transform_indices = @transform_7, window_bounds = array<i64: 1, 128>}, {pipeline_mode = #tpu.pipeline_mode<synchronous>, transform_indices = @transform_8, window_bounds = array<i64: 1, 128>}, {pipeline_mode = #tpu.pipeline_mode<synchronous>, transform_indices = @transform_9, window_bounds = array<i64: 128, 128>}, {pipeline_mode = #tpu.pipeline_mode<synchronous>, transform_indices = @transform_10, window_bounds = array<i64: 1, 128>}, {pipeline_mode = #tpu.pipeline_mode<synchronous>, transform_indices = @transform_11, window_bounds = array<i64: 8, 128>}, {transform_indices = @transform_12, window_bounds = array<i64: 8, 128>}]} {
    %c0_i32 = arith.constant 0 : i32
    %0 = arith.cmpi eq, %arg0, %c0_i32 : i32
    %1 = arith.extui %0 : i1 to i32
    %c0_i32_0 = arith.constant 0 : i32
    %2 = arith.cmpi ne, %1, %c0_i32_0 : i32
    scf.if %2 {
      %cst_16 = arith.constant 0.000000e+00 : f32
      %30 = vector.broadcast %cst_16 : f32 to vector<8x128xf32>
      %c0_17 = arith.constant 0 : index
      %c0_18 = arith.constant 0 : index
      %31 = vector.load %arg14[%c0_17, %c0_18] : memref<8x128xf32, #tpu.memory_space<vmem>>, vector<8x128xf32>
      tpu.vector_store %arg14[%c0_17, %c0_18], %30 {strides = array<i32>} : memref<8x128xf32, #tpu.memory_space<vmem>>, vector<8x128xf32>,
    } else {
    }
    %c0 = arith.constant 0 : index
    %c0_1 = arith.constant 0 : index
    %3 = vector.load %arg1[%c0, %c0_1] : memref<8x128xf32, #tpu.memory_space<vmem>>, vector<8x128xf32>
    %cst = arith.constant dense<0.000000e+00> : vector<128xf32>
    %4 = vector.multi_reduction <add>, %3, %cst [0] : vector<8x128xf32> to vector<128xf32>
    %5 = vector.shape_cast %4 : vector<128xf32> to vector<1x128xf32>
    %cst_2 = arith.constant 8.000000e+00 : f32
    %6 = vector.broadcast %cst_2 : f32 to vector<1x128xf32>
    %7 = arith.divf %5, %6 : vector<1x128xf32>
    %8 = vector.broadcast %7 : vector<1x128xf32> to vector<8x128xf32>
    %9 = arith.subf %3, %8 : vector<8x128xf32>
    %10 = arith.mulf %9, %9 : vector<8x128xf32>
    %cst_3 = arith.constant dense<0.000000e+00> : vector<128xf32>
    %11 = vector.multi_reduction <add>, %10, %cst_3 [0] : vector<8x128xf32> to vector<128xf32>
    %12 = vector.shape_cast %11 : vector<128xf32> to vector<1x128xf32>
    %cst_4 = arith.constant 8.000000e+00 : f32
    %13 = vector.broadcast %cst_4 : f32 to vector<1x128xf32>
    %14 = arith.divf %12, %13 : vector<1x128xf32>
    %cst_5 = arith.constant 9.99999974E-6 : f32
    %15 = vector.broadcast %cst_5 : f32 to vector<1x128xf32>
    %16 = arith.addf %14, %15 : vector<1x128xf32>
    %17 = math.rsqrt %16 : vector<1x128xf32>
    %18 = vector.broadcast %17 : vector<1x128xf32> to vector<8x128xf32>
    %19 = arith.mulf %9, %18 : vector<8x128xf32>
    %c0_6 = arith.constant 0 : index
    %c0_7 = arith.constant 0 : index
    %20 = vector.load %arg13[%c0_6, %c0_7] : memref<8x128xf32, #tpu.memory_space<vmem>>, vector<8x128xf32>
    tpu.vector_store %arg13[%c0_6, %c0_7], %19 {strides = array<i32>} : memref<8x128xf32, #tpu.memory_space<vmem>>, vector<8x128xf32>,
    %c0_8 = arith.constant 0 : index
    %c0_9 = arith.constant 0 : index
    %21 = vector.load %arg14[%c0_8, %c0_9] : memref<8x128xf32, #tpu.memory_space<vmem>>, vector<8x128xf32>
    %22 = arith.truncf %19 : vector<8x128xf32> to vector<8x128xbf16>
    %c0_10 = arith.constant 0 : index
    %c0_11 = arith.constant 0 : index
    %23 = vector.load %arg2[%c0_10, %c0_11] : memref<128x128xbf16, #tpu.memory_space<vmem>>, vector<128x128xbf16>
    %cst_12 = arith.constant dense<0.000000e+00> : vector<8x128xf32>
    %24 = tpu.matmul %22, %23, %cst_12 {dimension_numbers = #tpu.dot_dimension_numbers<[1], [0], [0], [1], [0, 0, 1, 1], [], []>} : vector<8x128xbf16>, vector<128x128xbf16>, vector<8x128xf32> -> vector<8x128xf32>
    %25 = arith.addf %21, %24 : vector<8x128xf32>
    %c0_13 = arith.constant 0 : index
    %c0_14 = arith.constant 0 : index
    %26 = vector.load %arg14[%c0_13, %c0_14] : memref<8x128xf32, #tpu.memory_space<vmem>>, vector<8x128xf32>
    tpu.vector_store %arg14[%c0_13, %c0_14], %25 {strides = array<i32>} : memref<8x128xf32, #tpu.memory_space<vmem>>, vector<8x128xf32>,
    %c1_i32 = arith.constant 1 : i32
    %27 = arith.cmpi eq, %arg0, %c1_i32 : i32
    %28 = arith.extui %27 : i1 to i32
    %c0_i32_15 = arith.constant 0 : i32
    %29 = arith.cmpi ne, %28, %c0_i32_15 : i32
    scf.if %29 {
      %c0_16 = arith.constant 0 : index
      %c0_17 = arith.constant 0 : index
      %30 = vector.load %arg14[%c0_16, %c0_17] : memref<8x128xf32, #tpu.memory_space<vmem>>, vector<8x128xf32>
      %c0_18 = arith.constant 0 : index
      %c0_19 = arith.constant 0 : index
      %31 = vector.load %arg3[%c0_18, %c0_19] : memref<1x128xf32, #tpu.memory_space<vmem>>, vector<1x128xf32>
      %32 = vector.broadcast %31 : vector<1x128xf32> to vector<8x128xf32>
      %33 = arith.addf %30, %32 : vector<8x128xf32>
      %c0_20 = arith.constant 0 : index
      %c0_21 = arith.constant 0 : index
      %34 = vector.load %arg4[%c0_20, %c0_21] : memref<1x128xf32, #tpu.memory_space<vmem>>, vector<1x128xf32>
      %c0_22 = arith.constant 0 : index
      %c0_23 = arith.constant 0 : index
      %35 = vector.load %arg5[%c0_22, %c0_23] : memref<1x128xf32, #tpu.memory_space<vmem>>, vector<1x128xf32>
      %cst_24 = arith.constant dense<0.000000e+00> : vector<128xf32>
      %36 = vector.multi_reduction <add>, %33, %cst_24 [0] : vector<8x128xf32> to vector<128xf32>
      %37 = vector.shape_cast %36 : vector<128xf32> to vector<1x128xf32>
      %cst_25 = arith.constant 8.000000e+00 : f32
      %38 = vector.broadcast %cst_25 : f32 to vector<1x128xf32>
      %39 = arith.divf %37, %38 : vector<1x128xf32>
      %40 = vector.broadcast %39 : vector<1x128xf32> to vector<8x128xf32>
      %41 = arith.subf %33, %40 : vector<8x128xf32>
      %42 = arith.mulf %41, %41 : vector<8x128xf32>
      %cst_26 = arith.constant dense<0.000000e+00> : vector<128xf32>
      %43 = vector.multi_reduction <add>, %42, %cst_26 [0] : vector<8x128xf32> to vector<128xf32>
      %44 = vector.shape_cast %43 : vector<128xf32> to vector<1x128xf32>
      %cst_27 = arith.constant 8.000000e+00 : f32
      %45 = vector.broadcast %cst_27 : f32 to vector<1x128xf32>
      %46 = arith.divf %44, %45 : vector<1x128xf32>
      %cst_28 = arith.constant 9.99999974E-6 : f32
      %47 = vector.broadcast %cst_28 : f32 to vector<1x128xf32>
      %48 = arith.addf %46, %47 : vector<1x128xf32>
      %49 = math.rsqrt %48 : vector<1x128xf32>
      %50 = vector.broadcast %49 : vector<1x128xf32> to vector<8x128xf32>
      %51 = arith.mulf %41, %50 : vector<8x128xf32>
      %52 = vector.broadcast %34 : vector<1x128xf32> to vector<8x128xf32>
      %53 = arith.mulf %51, %52 : vector<8x128xf32>
      %54 = vector.broadcast %35 : vector<1x128xf32> to vector<8x128xf32>
      %55 = arith.addf %53, %54 : vector<8x128xf32>
      %cst_29 = arith.constant 2.000000e-01 : f32
      %56 = vector.broadcast %cst_29 : f32 to vector<8x128xf32>
      %57 = arith.mulf %56, %55 : vector<8x128xf32>
      %58 = arith.maximumf %55, %57 : vector<8x128xf32>
      %59 = arith.truncf %58 : vector<8x128xf32> to vector<8x128xbf16>
      %c0_30 = arith.constant 0 : index
      %c0_31 = arith.constant 0 : index
      %60 = vector.load %arg6[%c0_30, %c0_31] : memref<128x128xbf16, #tpu.memory_space<vmem>>, vector<128x128xbf16>
      %cst_32 = arith.constant dense<0.000000e+00> : vector<8x128xf32>
      %61 = tpu.matmul %59, %60, %cst_32 {dimension_numbers = #tpu.dot_dimension_numbers<[1], [0], [0], [1], [0, 0, 1, 1], [], []>} : vector<8x128xbf16>, vector<128x128xbf16>, vector<8x128xf32> -> vector<8x128xf32>
      %c0_33 = arith.constant 0 : index
      %c0_34 = arith.constant 0 : index
      %62 = vector.load %arg7[%c0_33, %c0_34] : memref<1x128xf32, #tpu.memory_space<vmem>>, vector<1x128xf32>
      %63 = vector.broadcast %62 : vector<1x128xf32> to vector<8x128xf32>
      %64 = arith.addf %61, %63 : vector<8x128xf32>
      %c0_35 = arith.constant 0 : index
      %c0_36 = arith.constant 0 : index
      %65 = vector.load %arg8[%c0_35, %c0_36] : memref<1x128xf32, #tpu.memory_space<vmem>>, vector<1x128xf32>
      %c0_37 = arith.constant 0 : index
      %c0_38 = arith.constant 0 : index
      %66 = vector.load %arg9[%c0_37, %c0_38] : memref<1x128xf32, #tpu.memory_space<vmem>>, vector<1x128xf32>
      %cst_39 = arith.constant dense<0.000000e+00> : vector<128xf32>
      %67 = vector.multi_reduction <add>, %64, %cst_39 [0] : vector<8x128xf32> to vector<128xf32>
      %68 = vector.shape_cast %67 : vector<128xf32> to vector<1x128xf32>
      %cst_40 = arith.constant 8.000000e+00 : f32
      %69 = vector.broadcast %cst_40 : f32 to vector<1x128xf32>
      %70 = arith.divf %68, %69 : vector<1x128xf32>
      %71 = vector.broadcast %70 : vector<1x128xf32> to vector<8x128xf32>
      %72 = arith.subf %64, %71 : vector<8x128xf32>
      %73 = arith.mulf %72, %72 : vector<8x128xf32>
      %cst_41 = arith.constant dense<0.000000e+00> : vector<128xf32>
      %74 = vector.multi_reduction <add>, %73, %cst_41 [0] : vector<8x128xf32> to vector<128xf32>
      %75 = vector.shape_cast %74 : vector<128xf32> to vector<1x128xf32>
      %cst_42 = arith.constant 8.000000e+00 : f32
      %76 = vector.broadcast %cst_42 : f32 to vector<1x128xf32>
      %77 = arith.divf %75, %76 : vector<1x128xf32>
      %cst_43 = arith.constant 9.99999974E-6 : f32
      %78 = vector.broadcast %cst_43 : f32 to vector<1x128xf32>
      %79 = arith.addf %77, %78 : vector<1x128xf32>
      %80 = math.rsqrt %79 : vector<1x128xf32>
      %81 = vector.broadcast %80 : vector<1x128xf32> to vector<8x128xf32>
      %82 = arith.mulf %72, %81 : vector<8x128xf32>
      %83 = vector.broadcast %65 : vector<1x128xf32> to vector<8x128xf32>
      %84 = arith.mulf %82, %83 : vector<8x128xf32>
      %85 = vector.broadcast %66 : vector<1x128xf32> to vector<8x128xf32>
      %86 = arith.addf %84, %85 : vector<8x128xf32>
      %cst_44 = arith.constant 2.000000e-01 : f32
      %87 = vector.broadcast %cst_44 : f32 to vector<8x128xf32>
      %88 = arith.mulf %87, %86 : vector<8x128xf32>
      %89 = arith.maximumf %86, %88 : vector<8x128xf32>
      %90 = arith.truncf %89 : vector<8x128xf32> to vector<8x128xbf16>
      %c0_45 = arith.constant 0 : index
      %c0_46 = arith.constant 0 : index
      %91 = vector.load %arg10[%c0_45, %c0_46] : memref<128x128xbf16, #tpu.memory_space<vmem>>, vector<128x128xbf16>
      %cst_47 = arith.constant dense<0.000000e+00> : vector<8x128xf32>
      %92 = tpu.matmul %90, %91, %cst_47 {dimension_numbers = #tpu.dot_dimension_numbers<[1], [0], [0], [1], [0, 0, 1, 1], [], []>} : vector<8x128xbf16>, vector<128x128xbf16>, vector<8x128xf32> -> vector<8x128xf32>
      %c0_48 = arith.constant 0 : index
      %c0_49 = arith.constant 0 : index
      %93 = vector.load %arg11[%c0_48, %c0_49] : memref<1x128xf32, #tpu.memory_space<vmem>>, vector<1x128xf32>
      %94 = vector.broadcast %93 : vector<1x128xf32> to vector<8x128xf32>
      %95 = arith.addf %92, %94 : vector<8x128xf32>
      %c0_50 = arith.constant 0 : index
      %c0_51 = arith.constant 0 : index
      %96 = vector.load %arg12[%c0_50, %c0_51] : memref<8x128xf32, #tpu.memory_space<vmem>>, vector<8x128xf32>
      tpu.vector_store %arg12[%c0_50, %c0_51], %95 {strides = array<i32>} : memref<8x128xf32, #tpu.memory_space<vmem>>, vector<8x128xf32>,
    } else {
    }
    return
  }
  func.func @transform_0(%arg0: i32) -> (i32, i32) {
    %c0_i32 = arith.constant 0 : i32
    %c0_i32_0 = arith.constant 0 : i32
    return %c0_i32, %arg0 : i32, i32
  }
  func.func @transform_1(%arg0: i32) -> (i32, i32) {
    %c0_i32 = arith.constant 0 : i32
    %c0_i32_0 = arith.constant 0 : i32
    return %arg0, %c0_i32 : i32, i32
  }
  func.func @transform_2(%arg0: i32) -> (i32, i32) {
    %c0_i32 = arith.constant 0 : i32
    %c0_i32_0 = arith.constant 0 : i32
    %c0_i32_1 = arith.constant 0 : i32
    return %c0_i32, %c0_i32_0 : i32, i32
  }
  func.func @transform_3(%arg0: i32) -> (i32, i32) {
    %c0_i32 = arith.constant 0 : i32
    %c0_i32_0 = arith.constant 0 : i32
    %c0_i32_1 = arith.constant 0 : i32
    return %c0_i32, %c0_i32_0 : i32, i32
  }
  func.func @transform_4(%arg0: i32) -> (i32, i32) {
    %c0_i32 = arith.constant 0 : i32
    %c0_i32_0 = arith.constant 0 : i32
    %c0_i32_1 = arith.constant 0 : i32
    return %c0_i32, %c0_i32_0 : i32, i32
  }
  func.func @transform_5(%arg0: i32) -> (i32, i32) {
    %c0_i32 = arith.constant 0 : i32
    %c0_i32_0 = arith.constant 0 : i32
    %c0_i32_1 = arith.constant 0 : i32
    return %c0_i32, %c0_i32_0 : i32, i32
  }
  func.func @transform_6(%arg0: i32) -> (i32, i32) {
    %c0_i32 = arith.constant 0 : i32
    %c0_i32_0 = arith.constant 0 : i32
    %c0_i32_1 = arith.constant 0 : i32
    return %c0_i32, %c0_i32_0 : i32, i32
  }
  func.func @transform_7(%arg0: i32) -> (i32, i32) {
    %c0_i32 = arith.constant 0 : i32
    %c0_i32_0 = arith.constant 0 : i32
    %c0_i32_1 = arith.constant 0 : i32
    return %c0_i32, %c0_i32_0 : i32, i32
  }
  func.func @transform_8(%arg0: i32) -> (i32, i32) {
    %c0_i32 = arith.constant 0 : i32
    %c0_i32_0 = arith.constant 0 : i32
    %c0_i32_1 = arith.constant 0 : i32
    return %c0_i32, %c0_i32_0 : i32, i32
  }
  func.func @transform_9(%arg0: i32) -> (i32, i32) {
    %c0_i32 = arith.constant 0 : i32
    %c0_i32_0 = arith.constant 0 : i32
    %c0_i32_1 = arith.constant 0 : i32
    return %c0_i32, %c0_i32_0 : i32, i32
  }
  func.func @transform_10(%arg0: i32) -> (i32, i32) {
    %c0_i32 = arith.constant 0 : i32
    %c0_i32_0 = arith.constant 0 : i32
    %c0_i32_1 = arith.constant 0 : i32
    return %c0_i32, %c0_i32_0 : i32, i32
  }
  func.func @transform_11(%arg0: i32) -> (i32, i32) {
    %c0_i32 = arith.constant 0 : i32
    %c0_i32_0 = arith.constant 0 : i32
    %c0_i32_1 = arith.constant 0 : i32
    return %c0_i32, %c0_i32_0 : i32, i32
  }
  func.func @transform_12(%arg0: i32) -> (i32, i32) {
    %c0_i32 = arith.constant 0 : i32
    %c0_i32_0 = arith.constant 0 : i32
    return %c0_i32, %arg0 : i32, i32
  }
}

</mosaic_0001>

<llo_original>
// kernel: bn_resid_encoder_forward.2
$region0: #{bn_resid_encoder_forward.2}
  #allocation0 [shape = 'u32[]', space=smem, size = 0x4, offset = 0x4, fixed_abs, tag = 'smem constant byte address 0x4 - core index']
  #allocation1 [shape = 'u32[72,128]{1,0:T(1,128)}', space=vmem, size = 0x9000, scoped, tag = 'internal scratch']
  #allocation2 [shape = 'f32[8,128]{1,0:T(8,128)}', space=vmem, size = 0x1000, scoped, tag = 'scratch operand']
  %s0 = inlined_call_operand.vmem [shape: f32[8,384], index: 0, kind: input, shape index: {}]
  %s1 = inlined_call_operand.vmem [shape: bf16[384,128], index: 1, kind: input, shape index: {}]
  %s2 = inlined_call_operand.vmem [shape: f32[1,128], index: 2, kind: input, shape index: {}]
  %s3 = inlined_call_operand.vmem [shape: f32[1,128], index: 3, kind: input, shape index: {}]
  %s4 = inlined_call_operand.vmem [shape: f32[1,128], index: 4, kind: input, shape index: {}]
  %s5 = inlined_call_operand.vmem [shape: bf16[128,128], index: 5, kind: input, shape index: {}]
  %s6 = inlined_call_operand.vmem [shape: f32[1,128], index: 6, kind: input, shape index: {}]
  %s7 = inlined_call_operand.vmem [shape: f32[1,128], index: 7, kind: input, shape index: {}]
  %s8 = inlined_call_operand.vmem [shape: f32[1,128], index: 8, kind: input, shape index: {}]
  %s9 = inlined_call_operand.vmem [shape: bf16[128,128], index: 9, kind: input, shape index: {}]
  %s10 = inlined_call_operand.vmem [shape: f32[1,128], index: 10, kind: input, shape index: {}]
  %s11 = inlined_call_operand.hbm [shape: f32[8,128], index: 11, kind: output, shape index: {0}]
  %s12 = inlined_call_operand.hbm [shape: f32[8,384], index: 12, kind: output, shape index: {1}]
  %13 = xla_tuple %s11, %s12
  %s14 = sld [smem:[#allocation0]]
  $region93: #{bn_resid_encoder_forward.2} parent=0
    _
  %s16 = ssub.s32 1, %s14
  %s17 = scalar_select 0, %s16, %s14
  $region1: #{bn_resid_encoder_forward.2} parent=0
    #allocation3 [shape = 'u8[4096]{0}', space=vmem, size = 0x1000, scoped, tag = 'output window, operand 0, single buffered']
    #allocation4 [shape = 's32[2]{0}', space=sflag, size = 0x8, scoped, tag = 'scoped memory for bn_resid_encoder_forward.2']
    #allocation5 [shape = 'u8[8192]{0}', space=vmem, size = 0x2000, scoped, tag = 'output window, operand 1']
    #allocation6 [shape = 's32[2]{0}', space=sflag, size = 0x8, scoped, tag = 'scoped memory for bn_resid_encoder_forward.2']
    %18 = vsyncpa [#allocation4], 0
    %19 = vsyncpa [#allocation6], 0
    %s20 = scalar_lea.sflag [#allocation6], 1
    %21 = vsyncpa %s20, 0
    loop: start=0, step=1, limit=5
    $region2: #{bn_resid_encoder_forward.2} parent=1 // loop_pre_header
      _
    $region3: #{bn_resid_encoder_forward.2} parent=1 // loop_header
      %s23 = sphi 0, %s27
      %p24 = scmp.ge.s32.totalorder %s23, 5
      %s33 = sphi 0, %s35
      %s36 = sphi 0, %s33
      %s37 = sphi 0, %s36
      %s53 = sphi 0, %s37
      %s59 = sphi 0, %s61
      %s62 = sphi 0, %s59
      %s63 = sphi 0, %s62
      %s79 = sphi 0, %s63
      %s83 = sphi 0, %s83
      %s85 = sphi 0, %s83
      %s86 = sphi 0, %s85
      %s100 = sphi 0, %s86
      %s104 = sphi 0, %s104
      %s106 = sphi 0, %s104
      %s107 = sphi 0, %s106
      %s121 = sphi 0, %s107
      %s125 = sphi 0, %s125
      %s127 = sphi 0, %s125
      %s128 = sphi 0, %s127
      %s142 = sphi 0, %s128
      %s146 = sphi 0, %s146
      %s148 = sphi 0, %s146
      %s149 = sphi 0, %s148
      %s163 = sphi 0, %s149
      %s167 = sphi 0, %s167
      %s169 = sphi 0, %s167
      %s170 = sphi 0, %s169
      %s184 = sphi 0, %s170
      %s188 = sphi 0, %s188
      %s190 = sphi 0, %s188
      %s191 = sphi 0, %s190
      %s205 = sphi 0, %s191
      %s209 = sphi 0, %s209
      %s211 = sphi 0, %s209
      %s212 = sphi 0, %s211
      %s226 = sphi 0, %s212
      %s230 = sphi 0, %s230
      %s232 = sphi 0, %s230
      %s233 = sphi 0, %s232
      %s247 = sphi 0, %s233
      %s251 = sphi 0, %s251
      %s253 = sphi 0, %s251
      %s254 = sphi 0, %s253
      %s268 = sphi 0, %s254
      %s272 = sphi 0, %s272
      %s274 = sphi 0, %s272
      %s275 = sphi 0, %s274
      %s289 = sphi 0, %s275
      %s295 = sphi 0, %s297
      %s298 = sphi 0, %s295
      %s299 = sphi 0, %s298
      %s315 = sphi 0, %s299
    $region4: #{bn_resid_encoder_forward.2} parent=1 // loop_header_branch
      %26 = sbr.rel (%p24) target = $region8
    $region5: #{bn_resid_encoder_forward.2} parent=1 // loop_body
      %s28 = ssub.s32 %s23, 1
      %s29 = ssub.s32 %s23, 2
      %s30 = sadd.s32 %s23, 1
      %s31 = ssub.s32 %s23, %s30
      %p32 = scmp.eq.s32.totalorder %s31, 0
      %s34 = sadd.s32 %s33, 1
      %s35 = scalar_select %p32, %s33, %s34
      %p38 = pneg %p32
      %p39 = scmp.eq.s32.totalorder %s23, 2
      %p40 = por %p38, %p39
      %p41 = scmp.ne.s32.totalorder %s33, %s36
      %p42 = scmp.eq.s32.totalorder %s23, 0
      %p43 = por %p41, %p42
      %p44 = scmp.ne.s32.totalorder %s33, %s36
      %p45 = scmp.eq.s32.totalorder %s28, 2
      %p46 = por %p44, %p45
      %p47 = scmp.ne.s32.totalorder %s36, %s37
      %p48 = scmp.eq.s32.totalorder %s28, 0
      %p49 = por %p47, %p48
      %p50 = scmp.ne.s32.totalorder %s36, %s37
      %p51 = scmp.eq.s32.totalorder %s29, 2
      %p52 = por %p50, %p51
      %p54 = scmp.ne.s32.totalorder %s37, %s53
      %p55 = scmp.eq.s32.totalorder %s29, 0
      %p56 = por %p54, %p55
      %s57 = ssub.s32 %s23, %s30
      %p58 = scmp.eq.s32.totalorder %s57, 0
      %s60 = sadd.s32 %s59, 1
      %s61 = scalar_select %p58, %s59, %s60
      %p64 = pneg %p58
      %p65 = scmp.eq.s32.totalorder %s23, 2
      %p66 = por %p64, %p65
      %p67 = scmp.ne.s32.totalorder %s59, %s62
      %p68 = scmp.eq.s32.totalorder %s23, 0
      %p69 = por %p67, %p68
      %p70 = scmp.ne.s32.totalorder %s59, %s62
      %p71 = scmp.eq.s32.totalorder %s28, 2
      %p72 = por %p70, %p71
      %p73 = scmp.ne.s32.totalorder %s62, %s63
      %p74 = scmp.eq.s32.totalorder %s28, 0
      %p75 = por %p73, %p74
      %p76 = scmp.ne.s32.totalorder %s62, %s63
      %p77 = scmp.eq.s32.totalorder %s29, 2
      %p78 = por %p76, %p77
      %p80 = scmp.ne.s32.totalorder %s63, %s79
      %p81 = scmp.eq.s32.totalorder %s29, 0
      %p82 = por %p80, %p81
      %s84 = sadd.s32 %s83, 1
      %p87 = scmp.eq.s32.totalorder %s23, 2
      %p88 = scmp.ne.s32.totalorder %s83, %s85
      %p89 = scmp.eq.s32.totalorder %s23, 0
      %p90 = por %p88, %p89
      %p91 = scmp.ne.s32.totalorder %s83, %s85
      %p92 = scmp.eq.s32.totalorder %s28, 2
      %p93 = por %p91, %p92
      %p94 = scmp.ne.s32.totalorder %s85, %s86
      %p95 = scmp.eq.s32.totalorder %s28, 0
      %p96 = por %p94, %p95
      %p97 = scmp.ne.s32.totalorder %s85, %s86
      %p98 = scmp.eq.s32.totalorder %s29, 2
      %p99 = por %p97, %p98
      %p101 = scmp.ne.s32.totalorder %s86, %s100
      %p102 = scmp.eq.s32.totalorder %s29, 0
      %p103 = por %p101, %p102
      %s105 = sadd.s32 %s104, 1
      %p108 = scmp.eq.s32.totalorder %s23, 2
      %p109 = scmp.ne.s32.totalorder %s104, %s106
      %p110 = scmp.eq.s32.totalorder %s23, 0
      %p111 = por %p109, %p110
      %p112 = scmp.ne.s32.totalorder %s104, %s106
      %p113 = scmp.eq.s32.totalorder %s28, 2
      %p114 = por %p112, %p113
      %p115 = scmp.ne.s32.totalorder %s106, %s107
      %p116 = scmp.eq.s32.totalorder %s28, 0
      %p117 = por %p115, %p116
      %p118 = scmp.ne.s32.totalorder %s106, %s107
      %p119 = scmp.eq.s32.totalorder %s29, 2
      %p120 = por %p118, %p119
      %p122 = scmp.ne.s32.totalorder %s107, %s121
      %p123 = scmp.eq.s32.totalorder %s29, 0
      %p124 = por %p122, %p123
      %s126 = sadd.s32 %s125, 1
      %p129 = scmp.eq.s32.totalorder %s23, 2
      %p130 = scmp.ne.s32.totalorder %s125, %s127
      %p131 = scmp.eq.s32.totalorder %s23, 0
      %p132 = por %p130, %p131
      %p133 = scmp.ne.s32.totalorder %s125, %s127
      %p134 = scmp.eq.s32.totalorder %s28, 2
      %p135 = por %p133, %p134
      %p136 = scmp.ne.s32.totalorder %s127, %s128
      %p137 = scmp.eq.s32.totalorder %s28, 0
      %p138 = por %p136, %p137
      %p139 = scmp.ne.s32.totalorder %s127, %s128
      %p140 = scmp.eq.s32.totalorder %s29, 2
      %p141 = por %p139, %p140
      %p143 = scmp.ne.s32.totalorder %s128, %s142
      %p144 = scmp.eq.s32.totalorder %s29, 0
      %p145 = por %p143, %p144
      %s147 = sadd.s32 %s146, 1
      %p150 = scmp.eq.s32.totalorder %s23, 2
      %p151 = scmp.ne.s32.totalorder %s146, %s148
      %p152 = scmp.eq.s32.totalorder %s23, 0
      %p153 = por %p151, %p152
      %p154 = scmp.ne.s32.totalorder %s146, %s148
      %p155 = scmp.eq.s32.totalorder %s28, 2
      %p156 = por %p154, %p155
      %p157 = scmp.ne.s32.totalorder %s148, %s149
      %p158 = scmp.eq.s32.totalorder %s28, 0
      %p159 = por %p157, %p158
      %p160 = scmp.ne.s32.totalorder %s148, %s149
      %p161 = scmp.eq.s32.totalorder %s29, 2
      %p162 = por %p160, %p161
      %p164 = scmp.ne.s32.totalorder %s149, %s163
      %p165 = scmp.eq.s32.totalorder %s29, 0
      %p166 = por %p164, %p165
      %s168 = sadd.s32 %s167, 1
      %p171 = scmp.eq.s32.totalorder %s23, 2
      %p172 = scmp.ne.s32.totalorder %s167, %s169
      %p173 = scmp.eq.s32.totalorder %s23, 0
      %p174 = por %p172, %p173
      %p175 = scmp.ne.s32.totalorder %s167, %s169
      %p176 = scmp.eq.s32.totalorder %s28, 2
      %p177 = por %p175, %p176
      %p178 = scmp.ne.s32.totalorder %s169, %s170
      %p179 = scmp.eq.s32.totalorder %s28, 0
      %p180 = por %p178, %p179
      %p181 = scmp.ne.s32.totalorder %s169, %s170
      %p182 = scmp.eq.s32.totalorder %s29, 2
      %p183 = por %p181, %p182
      %p185 = scmp.ne.s32.totalorder %s170, %s184
      %p186 = scmp.eq.s32.totalorder %s29, 0
      %p187 = por %p185, %p186
      %s189 = sadd.s32 %s188, 1
      %p192 = scmp.eq.s32.totalorder %s23, 2
      %p193 = scmp.ne.s32.totalorder %s188, %s190
      %p194 = scmp.eq.s32.totalorder %s23, 0
      %p195 = por %p193, %p194
      %p196 = scmp.ne.s32.totalorder %s188, %s190
      %p197 = scmp.eq.s32.totalorder %s28, 2
      %p198 = por %p196, %p197
      %p199 = scmp.ne.s32.totalorder %s190, %s191
      %p200 = scmp.eq.s32.totalorder %s28, 0
      %p201 = por %p199, %p200
      %p202 = scmp.ne.s32.totalorder %s190, %s191
      %p203 = scmp.eq.s32.totalorder %s29, 2
      %p204 = por %p202, %p203
      %p206 = scmp.ne.s32.totalorder %s191, %s205
      %p207 = scmp.eq.s32.totalorder %s29, 0
      %p208 = por %p206, %p207
      %s210 = sadd.s32 %s209, 1
      %p213 = scmp.eq.s32.totalorder %s23, 2
      %p214 = scmp.ne.s32.totalorder %s209, %s211
      %p215 = scmp.eq.s32.totalorder %s23, 0
      %p216 = por %p214, %p215
      %p217 = scmp.ne.s32.totalorder %s209, %s211
      %p218 = scmp.eq.s32.totalorder %s28, 2
      %p219 = por %p217, %p218
      %p220 = scmp.ne.s32.totalorder %s211, %s212
      %p221 = scmp.eq.s32.totalorder %s28, 0
      %p222 = por %p220, %p221
      %p223 = scmp.ne.s32.totalorder %s211, %s212
      %p224 = scmp.eq.s32.totalorder %s29, 2
      %p225 = por %p223, %p224
      %p227 = scmp.ne.s32.totalorder %s212, %s226
      %p228 = scmp.eq.s32.totalorder %s29, 0
      %p229 = por %p227, %p228
      %s231 = sadd.s32 %s230, 1
      %p234 = scmp.eq.s32.totalorder %s23, 2
      %p235 = scmp.ne.s32.totalorder %s230, %s232
      %p236 = scmp.eq.s32.totalorder %s23, 0
      %p237 = por %p235, %p236
      %p238 = scmp.ne.s32.totalorder %s230, %s232
      %p239 = scmp.eq.s32.totalorder %s28, 2
      %p240 = por %p238, %p239
      %p241 = scmp.ne.s32.totalorder %s232, %s233
      %p242 = scmp.eq.s32.totalorder %s28, 0
      %p243 = por %p241, %p242
      %p244 = scmp.ne.s32.totalorder %s232, %s233
      %p245 = scmp.eq.s32.totalorder %s29, 2
      %p246 = por %p244, %p245
      %p248 = scmp.ne.s32.totalorder %s233, %s247
      %p249 = scmp.eq.s32.totalorder %s29, 0
      %p250 = por %p248, %p249
      %s252 = sadd.s32 %s251, 1
      %p255 = scmp.eq.s32.totalorder %s23, 2
      %p256 = scmp.ne.s32.totalorder %s251, %s253
      %p257 = scmp.eq.s32.totalorder %s23, 0
      %p258 = por %p256, %p257
      %p259 = scmp.ne.s32.totalorder %s251, %s253
      %p260 = scmp.eq.s32.totalorder %s28, 2
      %p261 = por %p259, %p260
      %p262 = scmp.ne.s32.totalorder %s253, %s254
      %p263 = scmp.eq.s32.totalorder %s28, 0
      %p264 = por %p262, %p263
      %p265 = scmp.ne.s32.totalorder %s253, %s254
      %p266 = scmp.eq.s32.totalorder %s29, 2
      %p267 = por %p265, %p266
      %p269 = scmp.ne.s32.totalorder %s254, %s268
      %p270 = scmp.eq.s32.totalorder %s29, 0
      %p271 = por %p269, %p270
      %s273 = sadd.s32 %s272, 1
      %p276 = scmp.eq.s32.totalorder %s23, 2
      %p277 = scmp.ne.s32.totalorder %s272, %s274
      %p278 = scmp.eq.s32.totalorder %s23, 0
      %p279 = por %p277, %p278
      %p280 = scmp.ne.s32.totalorder %s272, %s274
      %p281 = scmp.eq.s32.totalorder %s28, 2
      %p282 = por %p280, %p281
      %p283 = scmp.ne.s32.totalorder %s274, %s275
      %p284 = scmp.eq.s32.totalorder %s28, 0
      %p285 = por %p283, %p284
      %p286 = scmp.ne.s32.totalorder %s274, %s275
      %p287 = scmp.eq.s32.totalorder %s29, 2
      %p288 = por %p286, %p287
      %p290 = scmp.ne.s32.totalorder %s275, %s289
      %p291 = scmp.eq.s32.totalorder %s29, 0
      %p292 = por %p290, %p291
      %s293 = ssub.s32 %s23, %s30
      %p294 = scmp.eq.s32.totalorder %s293, 0
      %s296 = sadd.s32 %s295, 1
      %s297 = scalar_select %p294, %s295, %s296
      %p300 = pneg %p294
      %p301 = scmp.eq.s32.totalorder %s23, 2
      %p302 = por %p300, %p301
      %p303 = scmp.ne.s32.totalorder %s295, %s298
      %p304 = scmp.eq.s32.totalorder %s23, 0
      %p305 = por %p303, %p304
      %p306 = scmp.ne.s32.totalorder %s295, %s298
      %p307 = scmp.eq.s32.totalorder %s28, 2
      %p308 = por %p306, %p307
      %p309 = scmp.ne.s32.totalorder %s298, %s299
      %p310 = scmp.eq.s32.totalorder %s28, 0
      %p311 = por %p309, %p310
      %p312 = scmp.ne.s32.totalorder %s298, %s299
      %p313 = scmp.eq.s32.totalorder %s29, 2
      %p314 = por %p312, %p313
      %p316 = scmp.ne.s32.totalorder %s299, %s315
      %p317 = scmp.eq.s32.totalorder %s29, 0
      %p318 = por %p316, %p317
      %p319 = scmp.le.s32.totalorder 1, %s23
      %p320 = scmp.lt.s32.totalorder %s23, 4
      %p321 = pnand %p319, %p320
      %p322 = pneg %p321
      // Predicated region
      $region9: #{bn_resid_encoder_forward.2} parent=5 // pred_check
        _
      $region10: #{bn_resid_encoder_forward.2} parent=5 // pred_check_branch
        %324 = sbr.rel (%p321) target = $region12
      $region11: #{bn_resid_encoder_forward.2} parent=5 // pred_region
        %s325 = ssub.s32 %s23, 1
        // Predicated region
        $region13: #{bn_resid_encoder_forward.2} parent=11 // pred_check
          %p326 = pneg %p96
        $region14: #{bn_resid_encoder_forward.2} parent=11 // pred_check_branch
          %328 = sbr.rel (%p326) target = $region16
        $region15: #{bn_resid_encoder_forward.2} parent=11 // pred_region
          _
        $region16: #{bn_resid_encoder_forward.2} parent=11 // pred_fallthru
          _
        // Predicated region
        $region17: #{bn_resid_encoder_forward.2} parent=11 // pred_check
          %p329 = pneg %p117
        $region18: #{bn_resid_encoder_forward.2} parent=11 // pred_check_branch
          %331 = sbr.rel (%p329) target = $region20
        $region19: #{bn_resid_encoder_forward.2} parent=11 // pred_region
          _
        $region20: #{bn_resid_encoder_forward.2} parent=11 // pred_fallthru
          _
        // Predicated region
        $region21: #{bn_resid_encoder_forward.2} parent=11 // pred_check
          %p332 = pneg %p138
        $region22: #{bn_resid_encoder_forward.2} parent=11 // pred_check_branch
          %334 = sbr.rel (%p332) target = $region24
        $region23: #{bn_resid_encoder_forward.2} parent=11 // pred_region
          _
        $region24: #{bn_resid_encoder_forward.2} parent=11 // pred_fallthru
          _
        // Predicated region
        $region25: #{bn_resid_encoder_forward.2} parent=11 // pred_check
          %p335 = pneg %p159
        $region26: #{bn_resid_encoder_forward.2} parent=11 // pred_check_branch
          %337 = sbr.rel (%p335) target = $region28
        $region27: #{bn_resid_encoder_forward.2} parent=11 // pred_region
          _
        $region28: #{bn_resid_encoder_forward.2} parent=11 // pred_fallthru
          _
        // Predicated region
        $region29: #{bn_resid_encoder_forward.2} parent=11 // pred_check
          %p338 = pneg %p180
        $region30: #{bn_resid_encoder_forward.2} parent=11 // pred_check_branch
          %340 = sbr.rel (%p338) target = $region32
        $region31: #{bn_resid_encoder_forward.2} parent=11 // pred_region
          _
        $region32: #{bn_resid_encoder_forward.2} parent=11 // pred_fallthru
          _
        // Predicated region
        $region33: #{bn_resid_encoder_forward.2} parent=11 // pred_check
          %p341 = pneg %p201
        $region34: #{bn_resid_encoder_forward.2} parent=11 // pred_check_branch
          %343 = sbr.rel (%p341) target = $region36
        $region35: #{bn_resid_encoder_forward.2} parent=11 // pred_region
          _
        $region36: #{bn_resid_encoder_forward.2} parent=11 // pred_fallthru
          _
        // Predicated region
        $region37: #{bn_resid_encoder_forward.2} parent=11 // pred_check
          %p344 = pneg %p222
        $region38: #{bn_resid_encoder_forward.2} parent=11 // pred_check_branch
          %346 = sbr.rel (%p344) target = $region40
        $region39: #{bn_resid_encoder_forward.2} parent=11 // pred_region
          _
        $region40: #{bn_resid_encoder_forward.2} parent=11 // pred_fallthru
          _
        // Predicated region
        $region41: #{bn_resid_encoder_forward.2} parent=11 // pred_check
          %p347 = pneg %p243
        $region42: #{bn_resid_encoder_forward.2} parent=11 // pred_check_branch
          %349 = sbr.rel (%p347) target = $region44
        $region43: #{bn_resid_encoder_forward.2} parent=11 // pred_region
          _
        $region44: #{bn_resid_encoder_forward.2} parent=11 // pred_fallthru
          _
        // Predicated region
        $region45: #{bn_resid_encoder_forward.2} parent=11 // pred_check
          %p350 = pneg %p264
        $region46: #{bn_resid_encoder_forward.2} parent=11 // pred_check_branch
          %352 = sbr.rel (%p350) target = $region48
        $region47: #{bn_resid_encoder_forward.2} parent=11 // pred_region
          _
        $region48: #{bn_resid_encoder_forward.2} parent=11 // pred_fallthru
          _
      $region12: #{bn_resid_encoder_forward.2} parent=5 // pred_fallthru
        _
      %p353 = scmp.lt.s32.totalorder %s23, 3
      // Predicated region
      $region49: #{bn_resid_encoder_forward.2} parent=5 // pred_check
        %p354 = pneg %p353
      $region50: #{bn_resid_encoder_forward.2} parent=5 // pred_check_branch
        %356 = sbr.rel (%p354) target = $region52
      $region51: #{bn_resid_encoder_forward.2} parent=5 // pred_region
        // Predicated region
        $region53: #{bn_resid_encoder_forward.2} parent=51 // pred_check
          %p357 = pneg %p43
        $region54: #{bn_resid_encoder_forward.2} parent=51 // pred_check_branch
          %359 = sbr.rel (%p357) target = $region56
        $region55: #{bn_resid_encoder_forward.2} parent=51 // pred_region
          %p360 = scmp.lt.s32.totalorder %s23, 2
          %s361 = scalar_select %p360, %s23, 2
          %s362 = smul.addr %s361, 8
          %s363 = scalar_lea.vmem %s0, %s362
        $region56: #{bn_resid_encoder_forward.2} parent=51 // pred_fallthru
          _
        // Predicated region
        $region57: #{bn_resid_encoder_forward.2} parent=51 // pred_check
          %p364 = pneg %p69
        $region58: #{bn_resid_encoder_forward.2} parent=51 // pred_check_branch
          %366 = sbr.rel (%p364) target = $region60
        $region59: #{bn_resid_encoder_forward.2} parent=51 // pred_region
          %s367 = smul.u32 16, %s23
          %p368 = scmp.lt.s32.totalorder %s367, 47
          %s369 = scalar_select %p368, %s367, 47
          %s370 = smul.addr %s369, 4
          %s371 = scalar_lea.vmem %s1, %s370
          %s372 = smul.u32 16, %s23
        $region60: #{bn_resid_encoder_forward.2} parent=51 // pred_fallthru
          _
      $region52: #{bn_resid_encoder_forward.2} parent=5 // pred_fallthru
        _
      %p373 = scmp.le.s32.totalorder 1, %s23
      %p374 = scmp.lt.s32.totalorder %s23, 4
      %p375 = pnand %p373, %p374
      %p376 = pneg %p375
      // Predicated region
      $region61: #{bn_resid_encoder_forward.2} parent=5 // pred_check
        _
      $region62: #{bn_resid_encoder_forward.2} parent=5 // pred_check_branch
        %378 = sbr.rel (%p375) target = $region64
      $region63: #{bn_resid_encoder_forward.2} parent=5 // pred_region
        %s379 = ssub.s32 %s23, 1
        %p380 = scmp.lt.s32.totalorder %s28, 2
        %s381 = scalar_select %p380, %s28, 2
        %s382 = smul.addr %s381, 8
        %s383 = scalar_lea.vmem %s0, %s382
        %p384 = pneg %p49
        %p385 = pneg %p46
        %s386 = smul.u32 16, %s28
        %p387 = scmp.lt.s32.totalorder %s386, 47
        %s388 = scalar_select %p387, %s386, 47
        %s389 = smul.addr %s388, 4
        %s390 = scalar_lea.vmem %s1, %s389
        %p391 = pneg %p75
        %p392 = pneg %p72
        %p393 = pneg %p96
        %p394 = pneg %p93
        %p395 = pneg %p117
        %p396 = pneg %p114
        %p397 = pneg %p138
        %p398 = pneg %p135
        %p399 = pneg %p159
        %p400 = pneg %p156
        %p401 = pneg %p180
        %p402 = pneg %p177
        %p403 = pneg %p201
        %p404 = pneg %p198
        %p405 = pneg %p222
        %p406 = pneg %p219
        %p407 = pneg %p243
        %p408 = pneg %p240
        %p409 = pneg %p264
        %p410 = pneg %p261
        %p411 = pneg %p285
        %p412 = pneg %p282
        %p413 = pneg %p311
        %p414 = pneg %p308
        %s415 = sand.u32 %s298, 1
        %s416 = scalar_lea.sflag [#allocation6], %s415
        %s417 = sand.u32 %s298, 1
        %s418 = smul.addr %s417, 8
        %s419 = scalar_lea.vmem [#allocation5], %s418
        %p420 = scmp.lt.s32.totalorder %s28, 2
        %s421 = scalar_select %p420, %s28, 2
        %s422 = smul.addr %s421, 8
        %s423 = scalar_lea.vmem %s0, %s422
        %s424 = smul.u32 16, %s28
        %p425 = scmp.lt.s32.totalorder %s424, 47
        %s426 = scalar_select %p425, %s424, 47
        %s427 = smul.addr %s426, 4
        %s428 = scalar_lea.vmem %s1, %s427
        %s429 = smul.u32 16, %s28
        %p430 = scmp.eq.s32.totalorder %s28, 0
        // Predicated region
        $region65: #{bn_resid_encoder_forward.2} parent=63 // pred_check
          %p431 = pneg %p430
        $region66: #{bn_resid_encoder_forward.2} parent=63 // pred_check_branch
          %433 = sbr.rel (%p431) target = $region68
        $region67: #{bn_resid_encoder_forward.2} parent=63 // pred_region
          %434 = vst [vmem:[#allocation2] sm:$0xff] 0.0
        $region68: #{bn_resid_encoder_forward.2} parent=63 // pred_fallthru
          _
        %v435 = vld [vmem:[%s423] sm:$0xff]
        %v436 = vrot.slane %v435, 4
        %v437 = vadd.f32 %v435, %v436
        %v438 = vrot.slane %v437, 2
        %v439 = vadd.f32 %v437, %v438
        %v440 = vrot.slane %v439, 1
        %v441 = vadd.f32 %v439, %v440
        %v442 = vrcp.pop 8.0
        %v443 = vmul.f32 8.0, %v442
        %v444 = vsub.f32 1.0, %v443
        %v445 = vmul.f32 %v442, %v444
        %v446 = vadd.f32 %v442, %v445
        %vm447 = vweird.f32 %v442
        %v448 = vsel %vm447, %v442, %v446
        %v449 = vmul.f32 %v441, %v448
        %v450 = vsub.f32 %v435, %v449
        %v451 = vmul.f32 %v450, %v450
        %v452 = vrot.slane %v451, 4
        %v453 = vadd.f32 %v451, %v452
        %v454 = vrot.slane %v453, 2
        %v455 = vadd.f32 %v453, %v454
        %v456 = vrot.slane %v455, 1
        %v457 = vadd.f32 %v455, %v456
        %v458 = vmul.f32 %v457, %v448
        %v459 = vadd.f32 %v458, 1e-05
        %v460 = vrsqrt.pop %v459
        %v461 = vmul.f32 %v460, %v459
        %v462 = vmul.f32 %v461, %v460
        %v463 = vmul.f32 0.5, %v462
        %v464 = vsub.f32 1.5, %v463
        %v465 = vmul.f32 %v460, %v464
        %vm466 = vweird.f32 %v459
        %vm467 = vweird.f32 %v460
        %vm468 = vmor %vm466, %vm467
        %v469 = vsel %vm468, %v460, %v465
        %v470 = vmul.f32 %v450, %v469
        %471 = vst [vmem:[%s419] sm:$0xff] %v470
        %v472 = vld [vmem:[#allocation2] sm:$0xff]
        %v473 = vpack.c.bf16 %v470, %v470
        %v474 = vld [vmem:[%s428] sm:$0xf]
        %v475 = vld [vmem:[%s428 + $0x4] sm:$0xf]
        %v476 = vld [vmem:[%s428 + $0x8] sm:$0xf]
        %v477 = vld [vmem:[%s428 + $0xc] sm:$0xf]
        %v478 = vld [vmem:[%s428 + $0x10] sm:$0xf]
        %v479 = vld [vmem:[%s428 + $0x14] sm:$0xf]
        %v480 = vld [vmem:[%s428 + $0x18] sm:$0xf]
        %v481 = vld [vmem:[%s428 + $0x1c] sm:$0xf]
        %v482 = vld [vmem:[%s428 + $0x20] sm:$0xf]
        %v483 = vld [vmem:[%s428 + $0x24] sm:$0xf]
        %v484 = vld [vmem:[%s428 + $0x28] sm:$0xf]
        %v485 = vld [vmem:[%s428 + $0x2c] sm:$0xf]
        %v486 = vld [vmem:[%s428 + $0x30] sm:$0xf]
        %v487 = vld [vmem:[%s428 + $0x34] sm:$0xf]
        %v488 = vld [vmem:[%s428 + $0x38] sm:$0xf]
        %v489 = vld [vmem:[%s428 + $0x3c] sm:$0xf]
        %v506 = vunpack.c.l.b16 %v474
        %v507 = vunpack.c.l.b16 %v475
        %v508 = vunpack.c.l.b16 %v476
        %v509 = vunpack.c.l.b16 %v477
        %v510 = vunpack.c.l.b16 %v478
        %v511 = vunpack.c.l.b16 %v479
        %v512 = vunpack.c.l.b16 %v480
        %v513 = vunpack.c.l.b16 %v481
        %v514 = vunpack.c.l.b16 %v482
        %v515 = vunpack.c.l.b16 %v483
        %v516 = vunpack.c.l.b16 %v484
        %v517 = vunpack.c.l.b16 %v485
        %v518 = vunpack.c.l.b16 %v486
        %v519 = vunpack.c.l.b16 %v487
        %v520 = vunpack.c.l.b16 %v488
        %v521 = vunpack.c.l.b16 %v489
        %v522 = vpack.c.b16 %v507, %v506
        %v523 = vpack.c.b16 %v509, %v508
        %v524 = vpack.c.b16 %v511, %v510
        %v525 = vpack.c.b16 %v513, %v512
        %v526 = vpack.c.b16 %v515, %v514
        %v527 = vpack.c.b16 %v517, %v516
        %v528 = vpack.c.b16 %v519, %v518
        %v529 = vpack.c.b16 %v521, %v520
        %538 = vmatpush.bf16.msra.mxu0 %v529
        %539 = vmatpush.bf16.msra.mxu0 %v528
        %540 = vmatpush.bf16.msra.mxu0 %v527
        %541 = vmatpush.bf16.msra.mxu0 %v526
        %542 = vmatpush.bf16.msra.mxu0 %v525
        %543 = vmatpush.bf16.msra.mxu0 %v524
        %544 = vmatpush.bf16.msra.mxu0 %v523
        %545 = vmatpush.bf16.msra.mxu0 %v522
        %546 = vmatmul.bf16.gmra.mxu0 %v473
        %v547 = vpop.f32.mrf.mxu0
        %v548 = vadd.f32 0.0, %v547
        %v549 = vpop.f32.mrf.mxu0
        %550 = vdwg.mxu0
        %v551 = vadd.f32 %v472, %v548
        %552 = vst [vmem:[#allocation2] sm:$0xff] %v551
        %p553 = scmp.eq.s32.totalorder %s28, 2
        // Predicated region
        $region69: #{bn_resid_encoder_forward.2} parent=63 // pred_check
          %p554 = pneg %p553
        $region70: #{bn_resid_encoder_forward.2} parent=63 // pred_check_branch
          %556 = sbr.rel (%p554) target = $region72
        $region71: #{bn_resid_encoder_forward.2} parent=63 // pred_region
          %v557 = vld [vmem:[#allocation2] sm:$0xff]
          %v558 = vld [vmem:[%s2] sm:$0x1]
          %v560 = vperm.slane %v558, 0
          %v562 = vadd.f32 %v557, %v560
          %v563 = vld [vmem:[%s3] sm:$0x1]
          %v564 = vld [vmem:[%s4] sm:$0x1]
          %v565 = vrot.slane %v562, 4
          %v566 = vadd.f32 %v562, %v565
          %v567 = vrot.slane %v566, 2
          %v568 = vadd.f32 %v566, %v567
          %v569 = vrot.slane %v568, 1
          %v570 = vadd.f32 %v568, %v569
          %v571 = vmul.f32 %v570, %v448
          %v572 = vsub.f32 %v562, %v571
          %v573 = vmul.f32 %v572, %v572
          %v574 = vrot.slane %v573, 4
          %v575 = vadd.f32 %v573, %v574
          %v576 = vrot.slane %v575, 2
          %v577 = vadd.f32 %v575, %v576
          %v578 = vrot.slane %v577, 1
          %v579 = vadd.f32 %v577, %v578
          %v580 = vmul.f32 %v579, %v448
          %v581 = vadd.f32 %v580, 1e-05
          %v582 = vrsqrt.pop %v581
          %v583 = vmul.f32 %v582, %v581
          %v584 = vmul.f32 %v583, %v582
          %v585 = vmul.f32 0.5, %v584
          %v586 = vsub.f32 1.5, %v585
          %v587 = vmul.f32 %v582, %v586
          %vm588 = vweird.f32 %v581
          %vm589 = vweird.f32 %v582
          %vm590 = vmor %vm588, %vm589
          %v591 = vsel %vm590, %v582, %v587
          %v592 = vmul.f32 %v572, %v591
          %v594 = vperm.slane %v563, 0
          %v596 = vmul.f32 %v592, %v594
          %v598 = vperm.slane %v564, 0
          %v600 = vadd.f32 %v596, %v598
          %v601 = vmul.f32 %v600, 0.2
          %v602 = vmax.f32 %v600, %v601
          %v603 = vpack.c.bf16 %v602, %v602
          %v604 = vld [vmem:[%s5] sm:$0xf]
          %v605 = vld [vmem:[%s5 + $0x4] sm:$0xf]
          %v606 = vld [vmem:[%s5 + $0x8] sm:$0xf]
          %v607 = vld [vmem:[%s5 + $0xc] sm:$0xf]
          %v608 = vld [vmem:[%s5 + $0x10] sm:$0xf]
          %v609 = vld [vmem:[%s5 + $0x14] sm:$0xf]
          %v610 = vld [vmem:[%s5 + $0x18] sm:$0xf]
          %v611 = vld [vmem:[%s5 + $0x1c] sm:$0xf]
          %v612 = vld [vmem:[%s5 + $0x20] sm:$0xf]
          %v613 = vld [vmem:[%s5 + $0x24] sm:$0xf]
          %v614 = vld [vmem:[%s5 + $0x28] sm:$0xf]
          %v615 = vld [vmem:[%s5 + $0x2c] sm:$0xf]
          %v616 = vld [vmem:[%s5 + $0x30] sm:$0xf]
          %v617 = vld [vmem:[%s5 + $0x34] sm:$0xf]
          %v618 = vld [vmem:[%s5 + $0x38] sm:$0xf]
          %v619 = vld [vmem:[%s5 + $0x3c] sm:$0xf]
          %v620 = vld [vmem:[%s6] sm:$0x1]
          %v622 = vperm.slane %v620, 0
          %v640 = vunpack.c.l.b16 %v604
          %v641 = vunpack.c.l.b16 %v605
          %v642 = vunpack.c.l.b16 %v606
          %v643 = vunpack.c.l.b16 %v607
          %v644 = vunpack.c.l.b16 %v608
          %v645 = vunpack.c.l.b16 %v609
          %v646 = vunpack.c.l.b16 %v610
          %v647 = vunpack.c.l.b16 %v611
          %v648 = vunpack.c.l.b16 %v612
          %v649 = vunpack.c.l.b16 %v613
          %v650 = vunpack.c.l.b16 %v614
          %v651 = vunpack.c.l.b16 %v615
          %v652 = vunpack.c.l.b16 %v616
          %v653 = vunpack.c.l.b16 %v617
          %v654 = vunpack.c.l.b16 %v618
          %v655 = vunpack.c.l.b16 %v619
          %v656 = vpack.c.b16 %v641, %v640
          %v657 = vpack.c.b16 %v643, %v642
          %v658 = vpack.c.b16 %v645, %v644
          %v659 = vpack.c.b16 %v647, %v646
          %v660 = vpack.c.b16 %v649, %v648
          %v661 = vpack.c.b16 %v651, %v650
          %v662 = vpack.c.b16 %v653, %v652
          %v663 = vpack.c.b16 %v655, %v654
          %672 = vmatpush.bf16.msra.mxu0 %v663
          %673 = vmatpush.bf16.msra.mxu0 %v662
          %674 = vmatpush.bf16.msra.mxu0 %v661
          %675 = vmatpush.bf16.msra.mxu0 %v660
          %676 = vmatpush.bf16.msra.mxu0 %v659
          %677 = vmatpush.bf16.msra.mxu0 %v658
          %678 = vmatpush.bf16.msra.mxu0 %v657
          %679 = vmatpush.bf16.msra.mxu0 %v656
          %680 = vmatmul.bf16.gmra.mxu0 %v603
          %v681 = vpop.f32.mrf.mxu0
          %v682 = vadd.f32 %v622, %v681
          %v683 = vpop.f32.mrf.mxu0
          %684 = vdwg.mxu0
          %v685 = vld [vmem:[%s7] sm:$0x1]
          %v686 = vld [vmem:[%s8] sm:$0x1]
          %v687 = vrot.slane %v682, 4
          %v688 = vadd.f32 %v682, %v687
          %v689 = vrot.slane %v688, 2
          %v690 = vadd.f32 %v688, %v689
          %v691 = vrot.slane %v690, 1
          %v692 = vadd.f32 %v690, %v691
          %v693 = vmul.f32 %v692, %v448
          %v694 = vsub.f32 %v682, %v693
          %v695 = vmul.f32 %v694, %v694
          %v696 = vrot.slane %v695, 4
          %v697 = vadd.f32 %v695, %v696
          %v698 = vrot.slane %v697, 2
          %v699 = vadd.f32 %v697, %v698
          %v700 = vrot.slane %v699, 1
          %v701 = vadd.f32 %v699, %v700
          %v702 = vmul.f32 %v701, %v448
          %v703 = vadd.f32 %v702, 1e-05
          %v704 = vrsqrt.pop %v703
          %v705 = vmul.f32 %v704, %v703
          %v706 = vmul.f32 %v705, %v704
          %v707 = vmul.f32 0.5, %v706
          %v708 = vsub.f32 1.5, %v707
          %v709 = vmul.f32 %v704, %v708
          %vm710 = vweird.f32 %v703
          %vm711 = vweird.f32 %v704
          %vm712 = vmor %vm710, %vm711
          %v713 = vsel %vm712, %v704, %v709
          %v714 = vmul.f32 %v694, %v713
          %v716 = vperm.slane %v685, 0
          %v718 = vmul.f32 %v714, %v716
          %v720 = vperm.slane %v686, 0
          %v722 = vadd.f32 %v718, %v720
          %v723 = vmul.f32 %v722, 0.2
          %v724 = vmax.f32 %v722, %v723
          %v725 = vpack.c.bf16 %v724, %v724
          %v726 = vld [vmem:[%s9] sm:$0xf]
          %v727 = vld [vmem:[%s9 + $0x4] sm:$0xf]
          %v728 = vld [vmem:[%s9 + $0x8] sm:$0xf]
          %v729 = vld [vmem:[%s9 + $0xc] sm:$0xf]
          %v730 = vld [vmem:[%s9 + $0x10] sm:$0xf]
          %v731 = vld [vmem:[%s9 + $0x14] sm:$0xf]
          %v732 = vld [vmem:[%s9 + $0x18] sm:$0xf]
          %v733 = vld [vmem:[%s9 + $0x1c] sm:$0xf]
          %v734 = vld [vmem:[%s9 + $0x20] sm:$0xf]
          %v735 = vld [vmem:[%s9 + $0x24] sm:$0xf]
          %v736 = vld [vmem:[%s9 + $0x28] sm:$0xf]
          %v737 = vld [vmem:[%s9 + $0x2c] sm:$0xf]
          %v738 = vld [vmem:[%s9 + $0x30] sm:$0xf]
          %v739 = vld [vmem:[%s9 + $0x34] sm:$0xf]
          %v740 = vld [vmem:[%s9 + $0x38] sm:$0xf]
          %v741 = vld [vmem:[%s9 + $0x3c] sm:$0xf]
          %v742 = vld [vmem:[%s10] sm:$0x1]
          %v744 = vperm.slane %v742, 0
          %v762 = vunpack.c.l.b16 %v726
          %v763 = vunpack.c.l.b16 %v727
          %v764 = vunpack.c.l.b16 %v728
          %v765 = vunpack.c.l.b16 %v729
          %v766 = vunpack.c.l.b16 %v730
          %v767 = vunpack.c.l.b16 %v731
          %v768 = vunpack.c.l.b16 %v732
          %v769 = vunpack.c.l.b16 %v733
          %v770 = vunpack.c.l.b16 %v734
          %v771 = vunpack.c.l.b16 %v735
          %v772 = vunpack.c.l.b16 %v736
          %v773 = vunpack.c.l.b16 %v737
          %v774 = vunpack.c.l.b16 %v738
          %v775 = vunpack.c.l.b16 %v739
          %v776 = vunpack.c.l.b16 %v740
          %v777 = vunpack.c.l.b16 %v741
          %v778 = vpack.c.b16 %v763, %v762
          %v779 = vpack.c.b16 %v765, %v764
          %v780 = vpack.c.b16 %v767, %v766
          %v781 = vpack.c.b16 %v769, %v768
          %v782 = vpack.c.b16 %v771, %v770
          %v783 = vpack.c.b16 %v773, %v772
          %v784 = vpack.c.b16 %v775, %v774
          %v785 = vpack.c.b16 %v777, %v776
          %794 = vmatpush.bf16.msra.mxu0 %v785
          %795 = vmatpush.bf16.msra.mxu0 %v784
          %796 = vmatpush.bf16.msra.mxu0 %v783
          %797 = vmatpush.bf16.msra.mxu0 %v782
          %798 = vmatpush.bf16.msra.mxu0 %v781
          %799 = vmatpush.bf16.msra.mxu0 %v780
          %800 = vmatpush.bf16.msra.mxu0 %v779
          %801 = vmatpush.bf16.msra.mxu0 %v778
          %802 = vmatmul.bf16.gmra.mxu0 %v725
          %v803 = vpop.f32.mrf.mxu0
          %v804 = vadd.f32 %v744, %v803
          %v805 = vpop.f32.mrf.mxu0
          %806 = vdwg.mxu0
          %807 = vst [vmem:[#allocation3] sm:$0xff] %v804
        $region72: #{bn_resid_encoder_forward.2} parent=63 // pred_fallthru
          _
        %s808 = sand.u32 %s298, 1
        %s809 = scalar_lea.sflag [#allocation6], %s808
        %s810 = sand.u32 %s298, 1
        %s811 = smul.addr %s810, 8
        %s812 = scalar_lea.vmem [#allocation5], %s811
        // Predicated region
        $region73: #{bn_resid_encoder_forward.2} parent=63 // pred_check
          %p813 = pneg %p282
        $region74: #{bn_resid_encoder_forward.2} parent=63 // pred_check_branch
          %815 = sbr.rel (%p813) target = $region76
        $region75: #{bn_resid_encoder_forward.2} parent=63 // pred_region
          %817 = vsyncadd [#allocation4], 0
          %s819 = sshll.u32 [#allocation3], 4
          %s820 = int_to_ptr.vmem [resolvable:$true] %s819
          %s821 = sshll.u32 %s11, 4
          %s822 = int_to_ptr.hbm [resolvable:$true] %s821
          %824 = dma.vmem_to_hbm [thread:$0]  %s820, 128, %s822, [#allocation4]
        $region76: #{bn_resid_encoder_forward.2} parent=63 // pred_fallthru
          _
        // Predicated region
        $region77: #{bn_resid_encoder_forward.2} parent=63 // pred_check
          %p825 = pneg %p308
        $region78: #{bn_resid_encoder_forward.2} parent=63 // pred_check_branch
          %827 = sbr.rel (%p825) target = $region80
        $region79: #{bn_resid_encoder_forward.2} parent=63 // pred_region
          %829 = vsyncadd %s809, 0
          %s830 = smul.addr %s28, 8
          %s831 = scalar_lea.hbm %s12, %s830
          %s833 = sshll.u32 %s812, 4
          %s834 = int_to_ptr.vmem [resolvable:$true] %s833
          %s835 = sshll.u32 %s831, 4
          %s836 = int_to_ptr.hbm [resolvable:$true] %s835
          %838 = dma.vmem_to_hbm [thread:$0]  %s834, 128, %s836, %s809
        $region80: #{bn_resid_encoder_forward.2} parent=63 // pred_fallthru
          _
        // Predicated region
        $region81: #{bn_resid_encoder_forward.2} parent=63 // pred_check
          %p839 = pneg %p282
        $region82: #{bn_resid_encoder_forward.2} parent=63 // pred_check_branch
          %841 = sbr.rel (%p839) target = $region84
        $region83: #{bn_resid_encoder_forward.2} parent=63 // pred_region
          %843 = dma.done [#allocation4], 128
        $region84: #{bn_resid_encoder_forward.2} parent=63 // pred_fallthru
          _
      $region64: #{bn_resid_encoder_forward.2} parent=5 // pred_fallthru
        _
      %p844 = scmp.le.s32.totalorder 2, %s23
      // Predicated region
      $region85: #{bn_resid_encoder_forward.2} parent=5 // pred_check
        %p845 = pneg %p844
      $region86: #{bn_resid_encoder_forward.2} parent=5 // pred_check_branch
        %847 = sbr.rel (%p845) target = $region88
      $region87: #{bn_resid_encoder_forward.2} parent=5 // pred_region
        %s848 = ssub.s32 %s23, 2
        // Predicated region
        $region89: #{bn_resid_encoder_forward.2} parent=87 // pred_check
          %p849 = pneg %p314
        $region90: #{bn_resid_encoder_forward.2} parent=87 // pred_check_branch
          %851 = sbr.rel (%p849) target = $region92
        $region91: #{bn_resid_encoder_forward.2} parent=87 // pred_region
          %s852 = sand.u32 %s299, 1
          %s853 = scalar_lea.sflag [#allocation6], %s852
          %s854 = sand.u32 %s299, 1
          %s855 = smul.addr %s854, 8
          %s856 = scalar_lea.vmem [#allocation5], %s855
          %858 = dma.done %s853, 128
        $region92: #{bn_resid_encoder_forward.2} parent=87 // pred_fallthru
          _
      $region88: #{bn_resid_encoder_forward.2} parent=5 // pred_fallthru
        _
    $region6: #{bn_resid_encoder_forward.2} parent=1 // loop_footer
      %s27 = sadd.s32 1, %s23
    $region7: #{bn_resid_encoder_forward.2} parent=1 // loop_footer_branch
      %22 = sbr.rel target = $region3
    $region8: #{bn_resid_encoder_forward.2} parent=1 // loop_exit
      _
    %859 = vsyncpa [#allocation4], 1
    %s860 = scalar_lea.sflag [#allocation4], 1
    %861 = vsyncpa %s860, 1
    %862 = vsyncpa [#allocation6], 1
    %s863 = scalar_lea.sflag [#allocation6], 1
    %864 = vsyncpa %s863, 1

// kernel: bn_resid_encoder_forward.3
$region0: #{bn_resid_encoder_forward.3}
  #allocation0 [shape = 'u32[]', space=smem, size = 0x4, offset = 0x4, fixed_abs, tag = 'smem constant byte address 0x4 - core index']
  #allocation1 [shape = 'u32[72,128]{1,0:T(1,128)}', space=vmem, size = 0x9000, scoped, tag = 'internal scratch']
  #allocation2 [shape = 'f32[8,128]{1,0:T(8,128)}', space=vmem, size = 0x1000, scoped, tag = 'scratch operand']
  %s0 = inlined_call_operand.vmem [shape: f32[8,256], index: 0, kind: input, shape index: {}]
  %s1 = inlined_call_operand.vmem [shape: bf16[256,128], index: 1, kind: input, shape index: {}]
  %s2 = inlined_call_operand.vmem [shape: f32[1,128], index: 2, kind: input, shape index: {}]
  %s3 = inlined_call_operand.vmem [shape: f32[1,128], index: 3, kind: input, shape index: {}]
  %s4 = inlined_call_operand.vmem [shape: f32[1,128], index: 4, kind: input, shape index: {}]
  %s5 = inlined_call_operand.vmem [shape: bf16[128,128], index: 5, kind: input, shape index: {}]
  %s6 = inlined_call_operand.vmem [shape: f32[1,128], index: 6, kind: input, shape index: {}]
  %s7 = inlined_call_operand.vmem [shape: f32[1,128], index: 7, kind: input, shape index: {}]
  %s8 = inlined_call_operand.vmem [shape: f32[1,128], index: 8, kind: input, shape index: {}]
  %s9 = inlined_call_operand.vmem [shape: bf16[128,128], index: 9, kind: input, shape index: {}]
  %s10 = inlined_call_operand.vmem [shape: f32[1,128], index: 10, kind: input, shape index: {}]
  %s11 = inlined_call_operand.hbm [shape: f32[8,128], index: 11, kind: output, shape index: {0}]
  %s12 = inlined_call_operand.hbm [shape: f32[8,256], index: 12, kind: output, shape index: {1}]
  %13 = xla_tuple %s11, %s12
  %s14 = sld [smem:[#allocation0]]
  $region93: #{bn_resid_encoder_forward.3} parent=0
    _
  %s16 = ssub.s32 1, %s14
  %s17 = scalar_select 0, %s16, %s14
  $region1: #{bn_resid_encoder_forward.3} parent=0
    #allocation3 [shape = 'u8[4096]{0}', space=vmem, size = 0x1000, scoped, tag = 'output window, operand 0, single buffered']
    #allocation4 [shape = 's32[2]{0}', space=sflag, size = 0x8, scoped, tag = 'scoped memory for bn_resid_encoder_forward.3']
    #allocation5 [shape = 'u8[8192]{0}', space=vmem, size = 0x2000, scoped, tag = 'output window, operand 1']
    #allocation6 [shape = 's32[2]{0}', space=sflag, size = 0x8, scoped, tag = 'scoped memory for bn_resid_encoder_forward.3']
    %18 = vsyncpa [#allocation4], 0
    %19 = vsyncpa [#allocation6], 0
    %s20 = scalar_lea.sflag [#allocation6], 1
    %21 = vsyncpa %s20, 0
    loop: start=0, step=1, limit=4
    $region2: #{bn_resid_encoder_forward.3} parent=1 // loop_pre_header
      _
    $region3: #{bn_resid_encoder_forward.3} parent=1 // loop_header
      %s23 = sphi 0, %s27
      %p24 = scmp.ge.s32.totalorder %s23, 4
      %s33 = sphi 0, %s35
      %s36 = sphi 0, %s33
      %s37 = sphi 0, %s36
      %s53 = sphi 0, %s37
      %s59 = sphi 0, %s61
      %s62 = sphi 0, %s59
      %s63 = sphi 0, %s62
      %s79 = sphi 0, %s63
      %s83 = sphi 0, %s83
      %s85 = sphi 0, %s83
      %s86 = sphi 0, %s85
      %s100 = sphi 0, %s86
      %s104 = sphi 0, %s104
      %s106 = sphi 0, %s104
      %s107 = sphi 0, %s106
      %s121 = sphi 0, %s107
      %s125 = sphi 0, %s125
      %s127 = sphi 0, %s125
      %s128 = sphi 0, %s127
      %s142 = sphi 0, %s128
      %s146 = sphi 0, %s146
      %s148 = sphi 0, %s146
      %s149 = sphi 0, %s148
      %s163 = sphi 0, %s149
      %s167 = sphi 0, %s167
      %s169 = sphi 0, %s167
      %s170 = sphi 0, %s169
      %s184 = sphi 0, %s170
      %s188 = sphi 0, %s188
      %s190 = sphi 0, %s188
      %s191 = sphi 0, %s190
      %s205 = sphi 0, %s191
      %s209 = sphi 0, %s209
      %s211 = sphi 0, %s209
      %s212 = sphi 0, %s211
      %s226 = sphi 0, %s212
      %s230 = sphi 0, %s230
      %s232 = sphi 0, %s230
      %s233 = sphi 0, %s232
      %s247 = sphi 0, %s233
      %s251 = sphi 0, %s251
      %s253 = sphi 0, %s251
      %s254 = sphi 0, %s253
      %s268 = sphi 0, %s254
      %s272 = sphi 0, %s272
      %s274 = sphi 0, %s272
      %s275 = sphi 0, %s274
      %s289 = sphi 0, %s275
      %s295 = sphi 0, %s297
      %s298 = sphi 0, %s295
      %s299 = sphi 0, %s298
      %s315 = sphi 0, %s299
    $region4: #{bn_resid_encoder_forward.3} parent=1 // loop_header_branch
      %26 = sbr.rel (%p24) target = $region8
    $region5: #{bn_resid_encoder_forward.3} parent=1 // loop_body
      %s28 = ssub.s32 %s23, 1
      %s29 = ssub.s32 %s23, 2
      %s30 = sadd.s32 %s23, 1
      %s31 = ssub.s32 %s23, %s30
      %p32 = scmp.eq.s32.totalorder %s31, 0
      %s34 = sadd.s32 %s33, 1
      %s35 = scalar_select %p32, %s33, %s34
      %p38 = pneg %p32
      %p39 = scmp.eq.s32.totalorder %s23, 1
      %p40 = por %p38, %p39
      %p41 = scmp.ne.s32.totalorder %s33, %s36
      %p42 = scmp.eq.s32.totalorder %s23, 0
      %p43 = por %p41, %p42
      %p44 = scmp.ne.s32.totalorder %s33, %s36
      %p45 = scmp.eq.s32.totalorder %s28, 1
      %p46 = por %p44, %p45
      %p47 = scmp.ne.s32.totalorder %s36, %s37
      %p48 = scmp.eq.s32.totalorder %s28, 0
      %p49 = por %p47, %p48
      %p50 = scmp.ne.s32.totalorder %s36, %s37
      %p51 = scmp.eq.s32.totalorder %s29, 1
      %p52 = por %p50, %p51
      %p54 = scmp.ne.s32.totalorder %s37, %s53
      %p55 = scmp.eq.s32.totalorder %s29, 0
      %p56 = por %p54, %p55
      %s57 = ssub.s32 %s23, %s30
      %p58 = scmp.eq.s32.totalorder %s57, 0
      %s60 = sadd.s32 %s59, 1
      %s61 = scalar_select %p58, %s59, %s60
      %p64 = pneg %p58
      %p65 = scmp.eq.s32.totalorder %s23, 1
      %p66 = por %p64, %p65
      %p67 = scmp.ne.s32.totalorder %s59, %s62
      %p68 = scmp.eq.s32.totalorder %s23, 0
      %p69 = por %p67, %p68
      %p70 = scmp.ne.s32.totalorder %s59, %s62
      %p71 = scmp.eq.s32.totalorder %s28, 1
      %p72 = por %p70, %p71
      %p73 = scmp.ne.s32.totalorder %s62, %s63
      %p74 = scmp.eq.s32.totalorder %s28, 0
      %p75 = por %p73, %p74
      %p76 = scmp.ne.s32.totalorder %s62, %s63
      %p77 = scmp.eq.s32.totalorder %s29, 1
      %p78 = por %p76, %p77
      %p80 = scmp.ne.s32.totalorder %s63, %s79
      %p81 = scmp.eq.s32.totalorder %s29, 0
      %p82 = por %p80, %p81
      %s84 = sadd.s32 %s83, 1
      %p87 = scmp.eq.s32.totalorder %s23, 1
      %p88 = scmp.ne.s32.totalorder %s83, %s85
      %p89 = scmp.eq.s32.totalorder %s23, 0
      %p90 = por %p88, %p89
      %p91 = scmp.ne.s32.totalorder %s83, %s85
      %p92 = scmp.eq.s32.totalorder %s28, 1
      %p93 = por %p91, %p92
      %p94 = scmp.ne.s32.totalorder %s85, %s86
      %p95 = scmp.eq.s32.totalorder %s28, 0
      %p96 = por %p94, %p95
      %p97 = scmp.ne.s32.totalorder %s85, %s86
      %p98 = scmp.eq.s32.totalorder %s29, 1
      %p99 = por %p97, %p98
      %p101 = scmp.ne.s32.totalorder %s86, %s100
      %p102 = scmp.eq.s32.totalorder %s29, 0
      %p103 = por %p101, %p102
      %s105 = sadd.s32 %s104, 1
      %p108 = scmp.eq.s32.totalorder %s23, 1
      %p109 = scmp.ne.s32.totalorder %s104, %s106
      %p110 = scmp.eq.s32.totalorder %s23, 0
      %p111 = por %p109, %p110
      %p112 = scmp.ne.s32.totalorder %s104, %s106
      %p113 = scmp.eq.s32.totalorder %s28, 1
      %p114 = por %p112, %p113
      %p115 = scmp.ne.s32.totalorder %s106, %s107
      %p116 = scmp.eq.s32.totalorder %s28, 0
      %p117 = por %p115, %p116
      %p118 = scmp.ne.s32.totalorder %s106, %s107
      %p119 = scmp.eq.s32.totalorder %s29, 1
      %p120 = por %p118, %p119
      %p122 = scmp.ne.s32.totalorder %s107, %s121
      %p123 = scmp.eq.s32.totalorder %s29, 0
      %p124 = por %p122, %p123
      %s126 = sadd.s32 %s125, 1
      %p129 = scmp.eq.s32.totalorder %s23, 1
      %p130 = scmp.ne.s32.totalorder %s125, %s127
      %p131 = scmp.eq.s32.totalorder %s23, 0
      %p132 = por %p130, %p131
      %p133 = scmp.ne.s32.totalorder %s125, %s127
      %p134 = scmp.eq.s32.totalorder %s28, 1
      %p135 = por %p133, %p134
      %p136 = scmp.ne.s32.totalorder %s127, %s128
      %p137 = scmp.eq.s32.totalorder %s28, 0
      %p138 = por %p136, %p137
      %p139 = scmp.ne.s32.totalorder %s127, %s128
      %p140 = scmp.eq.s32.totalorder %s29, 1
      %p141 = por %p139, %p140
      %p143 = scmp.ne.s32.totalorder %s128, %s142
      %p144 = scmp.eq.s32.totalorder %s29, 0
      %p145 = por %p143, %p144
      %s147 = sadd.s32 %s146, 1
      %p150 = scmp.eq.s32.totalorder %s23, 1
      %p151 = scmp.ne.s32.totalorder %s146, %s148
      %p152 = scmp.eq.s32.totalorder %s23, 0
      %p153 = por %p151, %p152
      %p154 = scmp.ne.s32.totalorder %s146, %s148
      %p155 = scmp.eq.s32.totalorder %s28, 1
      %p156 = por %p154, %p155
      %p157 = scmp.ne.s32.totalorder %s148, %s149
      %p158 = scmp.eq.s32.totalorder %s28, 0
      %p159 = por %p157, %p158
      %p160 = scmp.ne.s32.totalorder %s148, %s149
      %p161 = scmp.eq.s32.totalorder %s29, 1
      %p162 = por %p160, %p161
      %p164 = scmp.ne.s32.totalorder %s149, %s163
      %p165 = scmp.eq.s32.totalorder %s29, 0
      %p166 = por %p164, %p165
      %s168 = sadd.s32 %s167, 1
      %p171 = scmp.eq.s32.totalorder %s23, 1
      %p172 = scmp.ne.s32.totalorder %s167, %s169
      %p173 = scmp.eq.s32.totalorder %s23, 0
      %p174 = por %p172, %p173
      %p175 = scmp.ne.s32.totalorder %s167, %s169
      %p176 = scmp.eq.s32.totalorder %s28, 1
      %p177 = por %p175, %p176
      %p178 = scmp.ne.s32.totalorder %s169, %s170
      %p179 = scmp.eq.s32.totalorder %s28, 0
      %p180 = por %p178, %p179
      %p181 = scmp.ne.s32.totalorder %s169, %s170
      %p182 = scmp.eq.s32.totalorder %s29, 1
      %p183 = por %p181, %p182
      %p185 = scmp.ne.s32.totalorder %s170, %s184
      %p186 = scmp.eq.s32.totalorder %s29, 0
      %p187 = por %p185, %p186
      %s189 = sadd.s32 %s188, 1
      %p192 = scmp.eq.s32.totalorder %s23, 1
      %p193 = scmp.ne.s32.totalorder %s188, %s190
      %p194 = scmp.eq.s32.totalorder %s23, 0
      %p195 = por %p193, %p194
      %p196 = scmp.ne.s32.totalorder %s188, %s190
      %p197 = scmp.eq.s32.totalorder %s28, 1
      %p198 = por %p196, %p197
      %p199 = scmp.ne.s32.totalorder %s190, %s191
      %p200 = scmp.eq.s32.totalorder %s28, 0
      %p201 = por %p199, %p200
      %p202 = scmp.ne.s32.totalorder %s190, %s191
      %p203 = scmp.eq.s32.totalorder %s29, 1
      %p204 = por %p202, %p203
      %p206 = scmp.ne.s32.totalorder %s191, %s205
      %p207 = scmp.eq.s32.totalorder %s29, 0
      %p208 = por %p206, %p207
      %s210 = sadd.s32 %s209, 1
      %p213 = scmp.eq.s32.totalorder %s23, 1
      %p214 = scmp.ne.s32.totalorder %s209, %s211
      %p215 = scmp.eq.s32.totalorder %s23, 0
      %p216 = por %p214, %p215
      %p217 = scmp.ne.s32.totalorder %s209, %s211
      %p218 = scmp.eq.s32.totalorder %s28, 1
      %p219 = por %p217, %p218
      %p220 = scmp.ne.s32.totalorder %s211, %s212
      %p221 = scmp.eq.s32.totalorder %s28, 0
      %p222 = por %p220, %p221
      %p223 = scmp.ne.s32.totalorder %s211, %s212
      %p224 = scmp.eq.s32.totalorder %s29, 1
      %p225 = por %p223, %p224
      %p227 = scmp.ne.s32.totalorder %s212, %s226
      %p228 = scmp.eq.s32.totalorder %s29, 0
      %p229 = por %p227, %p228
      %s231 = sadd.s32 %s230, 1
      %p234 = scmp.eq.s32.totalorder %s23, 1
      %p235 = scmp.ne.s32.totalorder %s230, %s232
      %p236 = scmp.eq.s32.totalorder %s23, 0
      %p237 = por %p235, %p236
      %p238 = scmp.ne.s32.totalorder %s230, %s232
      %p239 = scmp.eq.s32.totalorder %s28, 1
      %p240 = por %p238, %p239
      %p241 = scmp.ne.s32.totalorder %s232, %s233
      %p242 = scmp.eq.s32.totalorder %s28, 0
      %p243 = por %p241, %p242
      %p244 = scmp.ne.s32.totalorder %s232, %s233
      %p245 = scmp.eq.s32.totalorder %s29, 1
      %p246 = por %p244, %p245
      %p248 = scmp.ne.s32.totalorder %s233, %s247
      %p249 = scmp.eq.s32.totalorder %s29, 0
      %p250 = por %p248, %p249
      %s252 = sadd.s32 %s251, 1
      %p255 = scmp.eq.s32.totalorder %s23, 1
      %p256 = scmp.ne.s32.totalorder %s251, %s253
      %p257 = scmp.eq.s32.totalorder %s23, 0
      %p258 = por %p256, %p257
      %p259 = scmp.ne.s32.totalorder %s251, %s253
      %p260 = scmp.eq.s32.totalorder %s28, 1
      %p261 = por %p259, %p260
      %p262 = scmp.ne.s32.totalorder %s253, %s254
      %p263 = scmp.eq.s32.totalorder %s28, 0
      %p264 = por %p262, %p263
      %p265 = scmp.ne.s32.totalorder %s253, %s254
      %p266 = scmp.eq.s32.totalorder %s29, 1
      %p267 = por %p265, %p266
      %p269 = scmp.ne.s32.totalorder %s254, %s268
      %p270 = scmp.eq.s32.totalorder %s29, 0
      %p271 = por %p269, %p270
      %s273 = sadd.s32 %s272, 1
      %p276 = scmp.eq.s32.totalorder %s23, 1
      %p277 = scmp.ne.s32.totalorder %s272, %s274
      %p278 = scmp.eq.s32.totalorder %s23, 0
      %p279 = por %p277, %p278
      %p280 = scmp.ne.s32.totalorder %s272, %s274
      %p281 = scmp.eq.s32.totalorder %s28, 1
      %p282 = por %p280, %p281
      %p283 = scmp.ne.s32.totalorder %s274, %s275
      %p284 = scmp.eq.s32.totalorder %s28, 0
      %p285 = por %p283, %p284
      %p286 = scmp.ne.s32.totalorder %s274, %s275
      %p287 = scmp.eq.s32.totalorder %s29, 1
      %p288 = por %p286, %p287
      %p290 = scmp.ne.s32.totalorder %s275, %s289
      %p291 = scmp.eq.s32.totalorder %s29, 0
      %p292 = por %p290, %p291
      %s293 = ssub.s32 %s23, %s30
      %p294 = scmp.eq.s32.totalorder %s293, 0
      %s296 = sadd.s32 %s295, 1
      %s297 = scalar_select %p294, %s295, %s296
      %p300 = pneg %p294
      %p301 = scmp.eq.s32.totalorder %s23, 1
      %p302 = por %p300, %p301
      %p303 = scmp.ne.s32.totalorder %s295, %s298
      %p304 = scmp.eq.s32.totalorder %s23, 0
      %p305 = por %p303, %p304
      %p306 = scmp.ne.s32.totalorder %s295, %s298
      %p307 = scmp.eq.s32.totalorder %s28, 1
      %p308 = por %p306, %p307
      %p309 = scmp.ne.s32.totalorder %s298, %s299
      %p310 = scmp.eq.s32.totalorder %s28, 0
      %p311 = por %p309, %p310
      %p312 = scmp.ne.s32.totalorder %s298, %s299
      %p313 = scmp.eq.s32.totalorder %s29, 1
      %p314 = por %p312, %p313
      %p316 = scmp.ne.s32.totalorder %s299, %s315
      %p317 = scmp.eq.s32.totalorder %s29, 0
      %p318 = por %p316, %p317
      %p319 = scmp.le.s32.totalorder 1, %s23
      %p320 = scmp.lt.s32.totalorder %s23, 3
      %p321 = pnand %p319, %p320
      %p322 = pneg %p321
      // Predicated region
      $region9: #{bn_resid_encoder_forward.3} parent=5 // pred_check
        _
      $region10: #{bn_resid_encoder_forward.3} parent=5 // pred_check_branch
        %324 = sbr.rel (%p321) target = $region12
      $region11: #{bn_resid_encoder_forward.3} parent=5 // pred_region
        %s325 = ssub.s32 %s23, 1
        // Predicated region
        $region13: #{bn_resid_encoder_forward.3} parent=11 // pred_check
          %p326 = pneg %p96
        $region14: #{bn_resid_encoder_forward.3} parent=11 // pred_check_branch
          %328 = sbr.rel (%p326) target = $region16
        $region15: #{bn_resid_encoder_forward.3} parent=11 // pred_region
          _
        $region16: #{bn_resid_encoder_forward.3} parent=11 // pred_fallthru
          _
        // Predicated region
        $region17: #{bn_resid_encoder_forward.3} parent=11 // pred_check
          %p329 = pneg %p117
        $region18: #{bn_resid_encoder_forward.3} parent=11 // pred_check_branch
          %331 = sbr.rel (%p329) target = $region20
        $region19: #{bn_resid_encoder_forward.3} parent=11 // pred_region
          _
        $region20: #{bn_resid_encoder_forward.3} parent=11 // pred_fallthru
          _
        // Predicated region
        $region21: #{bn_resid_encoder_forward.3} parent=11 // pred_check
          %p332 = pneg %p138
        $region22: #{bn_resid_encoder_forward.3} parent=11 // pred_check_branch
          %334 = sbr.rel (%p332) target = $region24
        $region23: #{bn_resid_encoder_forward.3} parent=11 // pred_region
          _
        $region24: #{bn_resid_encoder_forward.3} parent=11 // pred_fallthru
          _
        // Predicated region
        $region25: #{bn_resid_encoder_forward.3} parent=11 // pred_check
          %p335 = pneg %p159
        $region26: #{bn_resid_encoder_forward.3} parent=11 // pred_check_branch
          %337 = sbr.rel (%p335) target = $region28
        $region27: #{bn_resid_encoder_forward.3} parent=11 // pred_region
          _
        $region28: #{bn_resid_encoder_forward.3} parent=11 // pred_fallthru
          _
        // Predicated region
        $region29: #{bn_resid_encoder_forward.3} parent=11 // pred_check
          %p338 = pneg %p180
        $region30: #{bn_resid_encoder_forward.3} parent=11 // pred_check_branch
          %340 = sbr.rel (%p338) target = $region32
        $region31: #{bn_resid_encoder_forward.3} parent=11 // pred_region
          _
        $region32: #{bn_resid_encoder_forward.3} parent=11 // pred_fallthru
          _
        // Predicated region
        $region33: #{bn_resid_encoder_forward.3} parent=11 // pred_check
          %p341 = pneg %p201
        $region34: #{bn_resid_encoder_forward.3} parent=11 // pred_check_branch
          %343 = sbr.rel (%p341) target = $region36
        $region35: #{bn_resid_encoder_forward.3} parent=11 // pred_region
          _
        $region36: #{bn_resid_encoder_forward.3} parent=11 // pred_fallthru
          _
        // Predicated region
        $region37: #{bn_resid_encoder_forward.3} parent=11 // pred_check
          %p344 = pneg %p222
        $region38: #{bn_resid_encoder_forward.3} parent=11 // pred_check_branch
          %346 = sbr.rel (%p344) target = $region40
        $region39: #{bn_resid_encoder_forward.3} parent=11 // pred_region
          _
        $region40: #{bn_resid_encoder_forward.3} parent=11 // pred_fallthru
          _
        // Predicated region
        $region41: #{bn_resid_encoder_forward.3} parent=11 // pred_check
          %p347 = pneg %p243
        $region42: #{bn_resid_encoder_forward.3} parent=11 // pred_check_branch
          %349 = sbr.rel (%p347) target = $region44
        $region43: #{bn_resid_encoder_forward.3} parent=11 // pred_region
          _
        $region44: #{bn_resid_encoder_forward.3} parent=11 // pred_fallthru
          _
        // Predicated region
        $region45: #{bn_resid_encoder_forward.3} parent=11 // pred_check
          %p350 = pneg %p264
        $region46: #{bn_resid_encoder_forward.3} parent=11 // pred_check_branch
          %352 = sbr.rel (%p350) target = $region48
        $region47: #{bn_resid_encoder_forward.3} parent=11 // pred_region
          _
        $region48: #{bn_resid_encoder_forward.3} parent=11 // pred_fallthru
          _
      $region12: #{bn_resid_encoder_forward.3} parent=5 // pred_fallthru
        _
      %p353 = scmp.lt.s32.totalorder %s23, 2
      // Predicated region
      $region49: #{bn_resid_encoder_forward.3} parent=5 // pred_check
        %p354 = pneg %p353
      $region50: #{bn_resid_encoder_forward.3} parent=5 // pred_check_branch
        %356 = sbr.rel (%p354) target = $region52
      $region51: #{bn_resid_encoder_forward.3} parent=5 // pred_region
        // Predicated region
        $region53: #{bn_resid_encoder_forward.3} parent=51 // pred_check
          %p357 = pneg %p43
        $region54: #{bn_resid_encoder_forward.3} parent=51 // pred_check_branch
          %359 = sbr.rel (%p357) target = $region56
        $region55: #{bn_resid_encoder_forward.3} parent=51 // pred_region
          %p360 = scmp.lt.s32.totalorder %s23, 1
          %s361 = scalar_select %p360, %s23, 1
          %s362 = smul.addr %s361, 8
          %s363 = scalar_lea.vmem %s0, %s362
        $region56: #{bn_resid_encoder_forward.3} parent=51 // pred_fallthru
          _
        // Predicated region
        $region57: #{bn_resid_encoder_forward.3} parent=51 // pred_check
          %p364 = pneg %p69
        $region58: #{bn_resid_encoder_forward.3} parent=51 // pred_check_branch
          %366 = sbr.rel (%p364) target = $region60
        $region59: #{bn_resid_encoder_forward.3} parent=51 // pred_region
          %s367 = smul.u32 16, %s23
          %p368 = scmp.lt.s32.totalorder %s367, 31
          %s369 = scalar_select %p368, %s367, 31
          %s370 = smul.addr %s369, 4
          %s371 = scalar_lea.vmem %s1, %s370
          %s372 = smul.u32 16, %s23
        $region60: #{bn_resid_encoder_forward.3} parent=51 // pred_fallthru
          _
      $region52: #{bn_resid_encoder_forward.3} parent=5 // pred_fallthru
        _
      %p373 = scmp.le.s32.totalorder 1, %s23
      %p374 = scmp.lt.s32.totalorder %s23, 3
      %p375 = pnand %p373, %p374
      %p376 = pneg %p375
      // Predicated region
      $region61: #{bn_resid_encoder_forward.3} parent=5 // pred_check
        _
      $region62: #{bn_resid_encoder_forward.3} parent=5 // pred_check_branch
        %378 = sbr.rel (%p375) target = $region64
      $region63: #{bn_resid_encoder_forward.3} parent=5 // pred_region
        %s379 = ssub.s32 %s23, 1
        %p380 = scmp.lt.s32.totalorder %s28, 1
        %s381 = scalar_select %p380, %s28, 1
        %s382 = smul.addr %s381, 8
        %s383 = scalar_lea.vmem %s0, %s382
        %p384 = pneg %p49
        %p385 = pneg %p46
        %s386 = smul.u32 16, %s28
        %p387 = scmp.lt.s32.totalorder %s386, 31
        %s388 = scalar_select %p387, %s386, 31
        %s389 = smul.addr %s388, 4
        %s390 = scalar_lea.vmem %s1, %s389
        %p391 = pneg %p75
        %p392 = pneg %p72
        %p393 = pneg %p96
        %p394 = pneg %p93
        %p395 = pneg %p117
        %p396 = pneg %p114
        %p397 = pneg %p138
        %p398 = pneg %p135
        %p399 = pneg %p159
        %p400 = pneg %p156
        %p401 = pneg %p180
        %p402 = pneg %p177
        %p403 = pneg %p201
        %p404 = pneg %p198
        %p405 = pneg %p222
        %p406 = pneg %p219
        %p407 = pneg %p243
        %p408 = pneg %p240
        %p409 = pneg %p264
        %p410 = pneg %p261
        %p411 = pneg %p285
        %p412 = pneg %p282
        %p413 = pneg %p311
        %p414 = pneg %p308
        %s415 = sand.u32 %s298, 1
        %s416 = scalar_lea.sflag [#allocation6], %s415
        %s417 = sand.u32 %s298, 1
        %s418 = smul.addr %s417, 8
        %s419 = scalar_lea.vmem [#allocation5], %s418
        %p420 = scmp.lt.s32.totalorder %s28, 1
        %s421 = scalar_select %p420, %s28, 1
        %s422 = smul.addr %s421, 8
        %s423 = scalar_lea.vmem %s0, %s422
        %s424 = smul.u32 16, %s28
        %p425 = scmp.lt.s32.totalorder %s424, 31
        %s426 = scalar_select %p425, %s424, 31
        %s427 = smul.addr %s426, 4
        %s428 = scalar_lea.vmem %s1, %s427
        %s429 = smul.u32 16, %s28
        %p430 = scmp.eq.s32.totalorder %s28, 0
        // Predicated region
        $region65: #{bn_resid_encoder_forward.3} parent=63 // pred_check
          %p431 = pneg %p430
        $region66: #{bn_resid_encoder_forward.3} parent=63 // pred_check_branch
          %433 = sbr.rel (%p431) target = $region68
        $region67: #{bn_resid_encoder_forward.3} parent=63 // pred_region
          %434 = vst [vmem:[#allocation2] sm:$0xff] 0.0
        $region68: #{bn_resid_encoder_forward.3} parent=63 // pred_fallthru
          _
        %v435 = vld [vmem:[%s423] sm:$0xff]
        %v436 = vrot.slane %v435, 4
        %v437 = vadd.f32 %v435, %v436
        %v438 = vrot.slane %v437, 2
        %v439 = vadd.f32 %v437, %v438
        %v440 = vrot.slane %v439, 1
        %v441 = vadd.f32 %v439, %v440
        %v442 = vrcp.pop 8.0
        %v443 = vmul.f32 8.0, %v442
        %v444 = vsub.f32 1.0, %v443
        %v445 = vmul.f32 %v442, %v444
        %v446 = vadd.f32 %v442, %v445
        %vm447 = vweird.f32 %v442
        %v448 = vsel %vm447, %v442, %v446
        %v449 = vmul.f32 %v441, %v448
        %v450 = vsub.f32 %v435, %v449
        %v451 = vmul.f32 %v450, %v450
        %v452 = vrot.slane %v451, 4
        %v453 = vadd.f32 %v451, %v452
        %v454 = vrot.slane %v453, 2
        %v455 = vadd.f32 %v453, %v454
        %v456 = vrot.slane %v455, 1
        %v457 = vadd.f32 %v455, %v456
        %v458 = vmul.f32 %v457, %v448
        %v459 = vadd.f32 %v458, 1e-05
        %v460 = vrsqrt.pop %v459
        %v461 = vmul.f32 %v460, %v459
        %v462 = vmul.f32 %v461, %v460
        %v463 = vmul.f32 0.5, %v462
        %v464 = vsub.f32 1.5, %v463
        %v465 = vmul.f32 %v460, %v464
        %vm466 = vweird.f32 %v459
        %vm467 = vweird.f32 %v460
        %vm468 = vmor %vm466, %vm467
        %v469 = vsel %vm468, %v460, %v465
        %v470 = vmul.f32 %v450, %v469
        %471 = vst [vmem:[%s419] sm:$0xff] %v470
        %v472 = vld [vmem:[#allocation2] sm:$0xff]
        %v473 = vpack.c.bf16 %v470, %v470
        %v474 = vld [vmem:[%s428] sm:$0xf]
        %v475 = vld [vmem:[%s428 + $0x4] sm:$0xf]
        %v476 = vld [vmem:[%s428 + $0x8] sm:$0xf]
        %v477 = vld [vmem:[%s428 + $0xc] sm:$0xf]
        %v478 = vld [vmem:[%s428 + $0x10] sm:$0xf]
        %v479 = vld [vmem:[%s428 + $0x14] sm:$0xf]
        %v480 = vld [vmem:[%s428 + $0x18] sm:$0xf]
        %v481 = vld [vmem:[%s428 + $0x1c] sm:$0xf]
        %v482 = vld [vmem:[%s428 + $0x20] sm:$0xf]
        %v483 = vld [vmem:[%s428 + $0x24] sm:$0xf]
        %v484 = vld [vmem:[%s428 + $0x28] sm:$0xf]
        %v485 = vld [vmem:[%s428 + $0x2c] sm:$0xf]
        %v486 = vld [vmem:[%s428 + $0x30] sm:$0xf]
        %v487 = vld [vmem:[%s428 + $0x34] sm:$0xf]
        %v488 = vld [vmem:[%s428 + $0x38] sm:$0xf]
        %v489 = vld [vmem:[%s428 + $0x3c] sm:$0xf]
        %v506 = vunpack.c.l.b16 %v474
        %v507 = vunpack.c.l.b16 %v475
        %v508 = vunpack.c.l.b16 %v476
        %v509 = vunpack.c.l.b16 %v477
        %v510 = vunpack.c.l.b16 %v478
        %v511 = vunpack.c.l.b16 %v479
        %v512 = vunpack.c.l.b16 %v480
        %v513 = vunpack.c.l.b16 %v481
        %v514 = vunpack.c.l.b16 %v482
        %v515 = vunpack.c.l.b16 %v483
        %v516 = vunpack.c.l.b16 %v484
        %v517 = vunpack.c.l.b16 %v485
        %v518 = vunpack.c.l.b16 %v486
        %v519 = vunpack.c.l.b16 %v487
        %v520 = vunpack.c.l.b16 %v488
        %v521 = vunpack.c.l.b16 %v489
        %v522 = vpack.c.b16 %v507, %v506
        %v523 = vpack.c.b16 %v509, %v508
        %v524 = vpack.c.b16 %v511, %v510
        %v525 = vpack.c.b16 %v513, %v512
        %v526 = vpack.c.b16 %v515, %v514
        %v527 = vpack.c.b16 %v517, %v516
        %v528 = vpack.c.b16 %v519, %v518
        %v529 = vpack.c.b16 %v521, %v520
        %538 = vmatpush.bf16.msra.mxu0 %v529
        %539 = vmatpush.bf16.msra.mxu0 %v528
        %540 = vmatpush.bf16.msra.mxu0 %v527
        %541 = vmatpush.bf16.msra.mxu0 %v526
        %542 = vmatpush.bf16.msra.mxu0 %v525
        %543 = vmatpush.bf16.msra.mxu0 %v524
        %544 = vmatpush.bf16.msra.mxu0 %v523
        %545 = vmatpush.bf16.msra.mxu0 %v522
        %546 = vmatmul.bf16.gmra.mxu0 %v473
        %v547 = vpop.f32.mrf.mxu0
        %v548 = vadd.f32 0.0, %v547
        %v549 = vpop.f32.mrf.mxu0
        %550 = vdwg.mxu0
        %v551 = vadd.f32 %v472, %v548
        %552 = vst [vmem:[#allocation2] sm:$0xff] %v551
        %p553 = scmp.eq.s32.totalorder %s28, 1
        // Predicated region
        $region69: #{bn_resid_encoder_forward.3} parent=63 // pred_check
          %p554 = pneg %p553
        $region70: #{bn_resid_encoder_forward.3} parent=63 // pred_check_branch
          %556 = sbr.rel (%p554) target = $region72
        $region71: #{bn_resid_encoder_forward.3} parent=63 // pred_region
          %v557 = vld [vmem:[#allocation2] sm:$0xff]
          %v558 = vld [vmem:[%s2] sm:$0x1]
          %v560 = vperm.slane %v558, 0
          %v562 = vadd.f32 %v557, %v560
          %v563 = vld [vmem:[%s3] sm:$0x1]
          %v564 = vld [vmem:[%s4] sm:$0x1]
          %v565 = vrot.slane %v562, 4
          %v566 = vadd.f32 %v562, %v565
          %v567 = vrot.slane %v566, 2
          %v568 = vadd.f32 %v566, %v567
          %v569 = vrot.slane %v568, 1
          %v570 = vadd.f32 %v568, %v569
          %v571 = vmul.f32 %v570, %v448
          %v572 = vsub.f32 %v562, %v571
          %v573 = vmul.f32 %v572, %v572
          %v574 = vrot.slane %v573, 4
          %v575 = vadd.f32 %v573, %v574
          %v576 = vrot.slane %v575, 2
          %v577 = vadd.f32 %v575, %v576
          %v578 = vrot.slane %v577, 1
          %v579 = vadd.f32 %v577, %v578
          %v580 = vmul.f32 %v579, %v448
          %v581 = vadd.f32 %v580, 1e-05
          %v582 = vrsqrt.pop %v581
          %v583 = vmul.f32 %v582, %v581
          %v584 = vmul.f32 %v583, %v582
          %v585 = vmul.f32 0.5, %v584
          %v586 = vsub.f32 1.5, %v585
          %v587 = vmul.f32 %v582, %v586
          %vm588 = vweird.f32 %v581
          %vm589 = vweird.f32 %v582
          %vm590 = vmor %vm588, %vm589
          %v591 = vsel %vm590, %v582, %v587
          %v592 = vmul.f32 %v572, %v591
          %v594 = vperm.slane %v563, 0
          %v596 = vmul.f32 %v592, %v594
          %v598 = vperm.slane %v564, 0
          %v600 = vadd.f32 %v596, %v598
          %v601 = vmul.f32 %v600, 0.2
          %v602 = vmax.f32 %v600, %v601
          %v603 = vpack.c.bf16 %v602, %v602
          %v604 = vld [vmem:[%s5] sm:$0xf]
          %v605 = vld [vmem:[%s5 + $0x4] sm:$0xf]
          %v606 = vld [vmem:[%s5 + $0x8] sm:$0xf]
          %v607 = vld [vmem:[%s5 + $0xc] sm:$0xf]
          %v608 = vld [vmem:[%s5 + $0x10] sm:$0xf]
          %v609 = vld [vmem:[%s5 + $0x14] sm:$0xf]
          %v610 = vld [vmem:[%s5 + $0x18] sm:$0xf]
          %v611 = vld [vmem:[%s5 + $0x1c] sm:$0xf]
          %v612 = vld [vmem:[%s5 + $0x20] sm:$0xf]
          %v613 = vld [vmem:[%s5 + $0x24] sm:$0xf]
          %v614 = vld [vmem:[%s5 + $0x28] sm:$0xf]
          %v615 = vld [vmem:[%s5 + $0x2c] sm:$0xf]
          %v616 = vld [vmem:[%s5 + $0x30] sm:$0xf]
          %v617 = vld [vmem:[%s5 + $0x34] sm:$0xf]
          %v618 = vld [vmem:[%s5 + $0x38] sm:$0xf]
          %v619 = vld [vmem:[%s5 + $0x3c] sm:$0xf]
          %v620 = vld [vmem:[%s6] sm:$0x1]
          %v622 = vperm.slane %v620, 0
          %v640 = vunpack.c.l.b16 %v604
          %v641 = vunpack.c.l.b16 %v605
          %v642 = vunpack.c.l.b16 %v606
          %v643 = vunpack.c.l.b16 %v607
          %v644 = vunpack.c.l.b16 %v608
          %v645 = vunpack.c.l.b16 %v609
          %v646 = vunpack.c.l.b16 %v610
          %v647 = vunpack.c.l.b16 %v611
          %v648 = vunpack.c.l.b16 %v612
          %v649 = vunpack.c.l.b16 %v613
          %v650 = vunpack.c.l.b16 %v614
          %v651 = vunpack.c.l.b16 %v615
          %v652 = vunpack.c.l.b16 %v616
          %v653 = vunpack.c.l.b16 %v617
          %v654 = vunpack.c.l.b16 %v618
          %v655 = vunpack.c.l.b16 %v619
          %v656 = vpack.c.b16 %v641, %v640
          %v657 = vpack.c.b16 %v643, %v642
          %v658 = vpack.c.b16 %v645, %v644
          %v659 = vpack.c.b16 %v647, %v646
          %v660 = vpack.c.b16 %v649, %v648
          %v661 = vpack.c.b16 %v651, %v650
          %v662 = vpack.c.b16 %v653, %v652
          %v663 = vpack.c.b16 %v655, %v654
          %672 = vmatpush.bf16.msra.mxu0 %v663
          %673 = vmatpush.bf16.msra.mxu0 %v662
          %674 = vmatpush.bf16.msra.mxu0 %v661
          %675 = vmatpush.bf16.msra.mxu0 %v660
          %676 = vmatpush.bf16.msra.mxu0 %v659
          %677 = vmatpush.bf16.msra.mxu0 %v658
          %678 = vmatpush.bf16.msra.mxu0 %v657
          %679 = vmatpush.bf16.msra.mxu0 %v656
          %680 = vmatmul.bf16.gmra.mxu0 %v603
          %v681 = vpop.f32.mrf.mxu0
          %v682 = vadd.f32 %v622, %v681
          %v683 = vpop.f32.mrf.mxu0
          %684 = vdwg.mxu0
          %v685 = vld [vmem:[%s7] sm:$0x1]
          %v686 = vld [vmem:[%s8] sm:$0x1]
          %v687 = vrot.slane %v682, 4
          %v688 = vadd.f32 %v682, %v687
          %v689 = vrot.slane %v688, 2
          %v690 = vadd.f32 %v688, %v689
          %v691 = vrot.slane %v690, 1
          %v692 = vadd.f32 %v690, %v691
          %v693 = vmul.f32 %v692, %v448
          %v694 = vsub.f32 %v682, %v693
          %v695 = vmul.f32 %v694, %v694
          %v696 = vrot.slane %v695, 4
          %v697 = vadd.f32 %v695, %v696
          %v698 = vrot.slane %v697, 2
          %v699 = vadd.f32 %v697, %v698
          %v700 = vrot.slane %v699, 1
          %v701 = vadd.f32 %v699, %v700
          %v702 = vmul.f32 %v701, %v448
          %v703 = vadd.f32 %v702, 1e-05
          %v704 = vrsqrt.pop %v703
          %v705 = vmul.f32 %v704, %v703
          %v706 = vmul.f32 %v705, %v704
          %v707 = vmul.f32 0.5, %v706
          %v708 = vsub.f32 1.5, %v707
          %v709 = vmul.f32 %v704, %v708
          %vm710 = vweird.f32 %v703
          %vm711 = vweird.f32 %v704
          %vm712 = vmor %vm710, %vm711
          %v713 = vsel %vm712, %v704, %v709
          %v714 = vmul.f32 %v694, %v713
          %v716 = vperm.slane %v685, 0
          %v718 = vmul.f32 %v714, %v716
          %v720 = vperm.slane %v686, 0
          %v722 = vadd.f32 %v718, %v720
          %v723 = vmul.f32 %v722, 0.2
          %v724 = vmax.f32 %v722, %v723
          %v725 = vpack.c.bf16 %v724, %v724
          %v726 = vld [vmem:[%s9] sm:$0xf]
          %v727 = vld [vmem:[%s9 + $0x4] sm:$0xf]
          %v728 = vld [vmem:[%s9 + $0x8] sm:$0xf]
          %v729 = vld [vmem:[%s9 + $0xc] sm:$0xf]
          %v730 = vld [vmem:[%s9 + $0x10] sm:$0xf]
          %v731 = vld [vmem:[%s9 + $0x14] sm:$0xf]
          %v732 = vld [vmem:[%s9 + $0x18] sm:$0xf]
          %v733 = vld [vmem:[%s9 + $0x1c] sm:$0xf]
          %v734 = vld [vmem:[%s9 + $0x20] sm:$0xf]
          %v735 = vld [vmem:[%s9 + $0x24] sm:$0xf]
          %v736 = vld [vmem:[%s9 + $0x28] sm:$0xf]
          %v737 = vld [vmem:[%s9 + $0x2c] sm:$0xf]
          %v738 = vld [vmem:[%s9 + $0x30] sm:$0xf]
          %v739 = vld [vmem:[%s9 + $0x34] sm:$0xf]
          %v740 = vld [vmem:[%s9 + $0x38] sm:$0xf]
          %v741 = vld [vmem:[%s9 + $0x3c] sm:$0xf]
          %v742 = vld [vmem:[%s10] sm:$0x1]
          %v744 = vperm.slane %v742, 0
          %v762 = vunpack.c.l.b16 %v726
          %v763 = vunpack.c.l.b16 %v727
          %v764 = vunpack.c.l.b16 %v728
          %v765 = vunpack.c.l.b16 %v729
          %v766 = vunpack.c.l.b16 %v730
          %v767 = vunpack.c.l.b16 %v731
          %v768 = vunpack.c.l.b16 %v732
          %v769 = vunpack.c.l.b16 %v733
          %v770 = vunpack.c.l.b16 %v734
          %v771 = vunpack.c.l.b16 %v735
          %v772 = vunpack.c.l.b16 %v736
          %v773 = vunpack.c.l.b16 %v737
          %v774 = vunpack.c.l.b16 %v738
          %v775 = vunpack.c.l.b16 %v739
          %v776 = vunpack.c.l.b16 %v740
          %v777 = vunpack.c.l.b16 %v741
          %v778 = vpack.c.b16 %v763, %v762
          %v779 = vpack.c.b16 %v765, %v764
          %v780 = vpack.c.b16 %v767, %v766
          %v781 = vpack.c.b16 %v769, %v768
          %v782 = vpack.c.b16 %v771, %v770
          %v783 = vpack.c.b16 %v773, %v772
          %v784 = vpack.c.b16 %v775, %v774
          %v785 = vpack.c.b16 %v777, %v776
          %794 = vmatpush.bf16.msra.mxu0 %v785
          %795 = vmatpush.bf16.msra.mxu0 %v784
          %796 = vmatpush.bf16.msra.mxu0 %v783
          %797 = vmatpush.bf16.msra.mxu0 %v782
          %798 = vmatpush.bf16.msra.mxu0 %v781
          %799 = vmatpush.bf16.msra.mxu0 %v780
          %800 = vmatpush.bf16.msra.mxu0 %v779
          %801 = vmatpush.bf16.msra.mxu0 %v778
          %802 = vmatmul.bf16.gmra.mxu0 %v725
          %v803 = vpop.f32.mrf.mxu0
          %v804 = vadd.f32 %v744, %v803
          %v805 = vpop.f32.mrf.mxu0
          %806 = vdwg.mxu0
          %807 = vst [vmem:[#allocation3] sm:$0xff] %v804
        $region72: #{bn_resid_encoder_forward.3} parent=63 // pred_fallthru
          _
        %s808 = sand.u32 %s298, 1
        %s809 = scalar_lea.sflag [#allocation6], %s808
        %s810 = sand.u32 %s298, 1
        %s811 = smul.addr %s810, 8
        %s812 = scalar_lea.vmem [#allocation5], %s811
        // Predicated region
        $region73: #{bn_resid_encoder_forward.3} parent=63 // pred_check
          %p813 = pneg %p282
        $region74: #{bn_resid_encoder_forward.3} parent=63 // pred_check_branch
          %815 = sbr.rel (%p813) target = $region76
        $region75: #{bn_resid_encoder_forward.3} parent=63 // pred_region
          %817 = vsyncadd [#allocation4], 0
          %s819 = sshll.u32 [#allocation3], 4
          %s820 = int_to_ptr.vmem [resolvable:$true] %s819
          %s821 = sshll.u32 %s11, 4
          %s822 = int_to_ptr.hbm [resolvable:$true] %s821
          %824 = dma.vmem_to_hbm [thread:$0]  %s820, 128, %s822, [#allocation4]
        $region76: #{bn_resid_encoder_forward.3} parent=63 // pred_fallthru
          _
        // Predicated region
        $region77: #{bn_resid_encoder_forward.3} parent=63 // pred_check
          %p825 = pneg %p308
        $region78: #{bn_resid_encoder_forward.3} parent=63 // pred_check_branch
          %827 = sbr.rel (%p825) target = $region80
        $region79: #{bn_resid_encoder_forward.3} parent=63 // pred_region
          %829 = vsyncadd %s809, 0
          %s830 = smul.addr %s28, 8
          %s831 = scalar_lea.hbm %s12, %s830
          %s833 = sshll.u32 %s812, 4
          %s834 = int_to_ptr.vmem [resolvable:$true] %s833
          %s835 = sshll.u32 %s831, 4
          %s836 = int_to_ptr.hbm [resolvable:$true] %s835
          %838 = dma.vmem_to_hbm [thread:$0]  %s834, 128, %s836, %s809
        $region80: #{bn_resid_encoder_forward.3} parent=63 // pred_fallthru
          _
        // Predicated region
        $region81: #{bn_resid_encoder_forward.3} parent=63 // pred_check
          %p839 = pneg %p282
        $region82: #{bn_resid_encoder_forward.3} parent=63 // pred_check_branch
          %841 = sbr.rel (%p839) target = $region84
        $region83: #{bn_resid_encoder_forward.3} parent=63 // pred_region
          %843 = dma.done [#allocation4], 128
        $region84: #{bn_resid_encoder_forward.3} parent=63 // pred_fallthru
          _
      $region64: #{bn_resid_encoder_forward.3} parent=5 // pred_fallthru
        _
      %p844 = scmp.le.s32.totalorder 2, %s23
      // Predicated region
      $region85: #{bn_resid_encoder_forward.3} parent=5 // pred_check
        %p845 = pneg %p844
      $region86: #{bn_resid_encoder_forward.3} parent=5 // pred_check_branch
        %847 = sbr.rel (%p845) target = $region88
      $region87: #{bn_resid_encoder_forward.3} parent=5 // pred_region
        %s848 = ssub.s32 %s23, 2
        // Predicated region
        $region89: #{bn_resid_encoder_forward.3} parent=87 // pred_check
          %p849 = pneg %p314
        $region90: #{bn_resid_encoder_forward.3} parent=87 // pred_check_branch
          %851 = sbr.rel (%p849) target = $region92
        $region91: #{bn_resid_encoder_forward.3} parent=87 // pred_region
          %s852 = sand.u32 %s299, 1
          %s853 = scalar_lea.sflag [#allocation6], %s852
          %s854 = sand.u32 %s299, 1
          %s855 = smul.addr %s854, 8
          %s856 = scalar_lea.vmem [#allocation5], %s855
          %858 = dma.done %s853, 128
        $region92: #{bn_resid_encoder_forward.3} parent=87 // pred_fallthru
          _
      $region88: #{bn_resid_encoder_forward.3} parent=5 // pred_fallthru
        _
    $region6: #{bn_resid_encoder_forward.3} parent=1 // loop_footer
      %s27 = sadd.s32 1, %s23
    $region7: #{bn_resid_encoder_forward.3} parent=1 // loop_footer_branch
      %22 = sbr.rel target = $region3
    $region8: #{bn_resid_encoder_forward.3} parent=1 // loop_exit
      _
    %859 = vsyncpa [#allocation4], 1
    %s860 = scalar_lea.sflag [#allocation4], 1
    %861 = vsyncpa %s860, 1
    %862 = vsyncpa [#allocation6], 1
    %s863 = scalar_lea.sflag [#allocation6], 1
    %864 = vsyncpa %s863, 1

</llo_original>
